<compile_context>
chip_gen: v7x
topology: tpu7x:2x2x1
jax: 0.10.0
libtpu: 0.0.40
codegen_flags: <defaults>
</compile_context>

<pallas_src>
import functools

import jax
import jax.numpy as jnp
from jax.experimental import pallas as pl
from jax.experimental.pallas import tpu as pltpu


BLOCK_CHANNELS = (64, 128, 256)


def _round_up(v, m):
    return -(-v // m) * m


def _cdiv(a, b):
    return -(-a // b)


def _supports_fast_bf16():
    """True on TPU generations with a bf16-native VALU (v6e / v7x)."""
    try:
        kind = jax.devices()[0].device_kind.lower()
    except Exception:
        return False
    return ("v6" in kind) or ("v7" in kind)


def _pointnet_kernel(x_ref, w1_ref, b1_ref, w2_ref, b2_ref, w3_ref, b3_ref,
                     wp_ref, bp_ref, o_ref, gmax_ref, *, tb, tp, epi_dtype):
    # Grid: (batch block, point chunk).  x_ref block: (TB, TP, 3).
    p = pl.program_id(1)

    x = x_ref[...].reshape(tb * tp, x_ref.shape[-1]).astype(epi_dtype)

    # --- Layer 1 (3 -> 64): K=3 would waste a full MXU pass, so it stays on the
    #     VPU as three broadcast-FMAs (bf16 on v6e/v7x halves packed VALU work;
    #     f32 on v5e which has no bf16 VALU).
    w1 = w1_ref[...]
    h = (x[:, 0:1] * w1[0:1, :]
         + x[:, 1:2] * w1[1:2, :]
         + x[:, 2:3] * w1[2:3, :]) + b1_ref[...]
    h = jnp.maximum(h, 0)                                    # (rows, 64)

    # --- Layer 2 (64 -> 128): bf16 MXU matmul, f32 accumulate, epilogue in
    #     epi_dtype (single downcast of the accumulator, then bias/ReLU).
    h = jnp.dot(h.astype(jnp.bfloat16), w2_ref[...],
                preferred_element_type=jnp.float32)
    h = jnp.maximum(h.astype(epi_dtype) + b2_ref[...], 0)    # (rows, 128)

    # --- Layer 3 (128 -> 256)
    h = jnp.dot(h.astype(jnp.bfloat16), w3_ref[...],
                preferred_element_type=jnp.float32)
    h = jnp.maximum(h.astype(epi_dtype) + b3_ref[...], 0)    # (rows, 256)

    # --- Running max over the point axis (torch.max(x, 1)[0]), chunked.
    chunk_max = jnp.max(h.reshape(tb, tp, h.shape[-1]), axis=1)   # (TB, 256)

    @pl.when(p == 0)
    def _():
        gmax_ref[...] = chunk_max

    @pl.when(p > 0)
    def _():
        gmax_ref[...] = jnp.maximum(gmax_ref[...], chunk_max)

    # --- final_projection, only once per batch block; lane-dense (TB, 1024) store.
    @pl.when(p == pl.num_programs(1) - 1)
    def _():
        y = jnp.dot(gmax_ref[...].astype(jnp.bfloat16), wp_ref[...],
                    preferred_element_type=jnp.float32) + bp_ref[...]
        o_ref[0] = y.astype(o_ref.dtype)


def dp3_pointnet_encoder_xyz(x, params, *, target_rows=8192, bf16_compute=None):
    """x: (B, N, 3) float32 -> (B, out_channels) float32."""
    B, N, C_in = x.shape
    assert C_in == 3, "PointNetEncoderXYZ only supports 3 channels"
    w1, b1, w2, b2, w3, b3, wp, bp = params
    out_channels = wp.shape[1]

    if bf16_compute is None:
        bf16_compute = _supports_fast_bf16()
    epi_dtype = jnp.bfloat16 if bf16_compute else jnp.float32

    # ---- Tile selection: TB*TP ~ target_rows per grid step. ----
    n8 = _round_up(N, 8)
    if n8 <= target_rows:
        tp, pc = n8, 1
        tb = max(1, min(B, target_rows // n8))
        if B >= 2:                      # keep >= 2 batch steps -> v7x megacore
            tb = min(tb, _cdiv(B, 2))
        gb = _cdiv(B, tb)
        tb = _cdiv(B, gb)               # rebalance to minimize batch padding
    else:
        tb = 1                          # chunk the point axis instead
        pc = _cdiv(n8, target_rows)
        tp = _round_up(_cdiv(n8, pc), 8)
        pc = _cdiv(n8, tp)
        gb = B
    n_pad, b_pad = pc * tp, gb * tb

    # ---- Host-side padding: points padded with copies of point 0 (max-pool is
    #      invariant); padded batch rows are sliced off at the end. ----
    if n_pad > N:
        x = jnp.concatenate(
            [x, jnp.broadcast_to(x[:, :1, :], (B, n_pad - N, C_in))], axis=1)
    if b_pad > B:
        x = jnp.concatenate(
            [x, jnp.zeros((b_pad - B, n_pad, C_in), x.dtype)], axis=0)

    # ---- Host-side weight prep: bf16 for MXU operands, epi_dtype for the
    #      VPU-side layer-1 weight and biases. ----
    w1k = w1.astype(epi_dtype)
    b1k, b2k, b3k = (b.astype(epi_dtype) for b in (b1, b2, b3))
    w2k, w3k, wpk = (w.astype(jnp.bfloat16) for w in (w2, w3, wp))
    bpk = bp.astype(jnp.float32)

    # ---- VMEM budget (per row: x tile lane-padded to 128 lanes = 512 B, double
    #      buffered, + f32 and bf16 copies of the 64/128/256-wide activations),
    #      plus weights/output slack; capped for v7x's 64 MiB physical VMEM. ----
    rows = tb * tp
    est = rows * 3712 + 3 * 1024 * 1024
    vmem_limit = int(min(56 * 1024 * 1024,
                         max(int(est * 1.25), 32 * 1024 * 1024)))

    flops = (2 * b_pad * n_pad * (3 * 64 + 64 * 128 + 128 * 256)
             + 2 * b_pad * BLOCK_CHANNELS[-1] * out_channels)
    bytes_accessed = int(
        x.size * x.dtype.itemsize
        + sum(a.size * a.dtype.itemsize
              for a in (w1k, b1k, w2k, b2k, w3k, b3k, wpk, bpk))
        + b_pad * out_channels * 4)

    const = lambda a: pl.BlockSpec(a.shape, lambda b, p: (0,) * a.ndim)
    kernel = functools.partial(_pointnet_kernel, tb=tb, tp=tp,
                               epi_dtype=epi_dtype)

    out3 = pl.pallas_call(
        kernel,
        out_shape=jax.ShapeDtypeStruct((gb, tb, out_channels), x.dtype),
        grid_spec=pltpu.PrefetchScalarGridSpec(
            num_scalar_prefetch=0,
            grid=(gb, pc),
            in_specs=[
                pl.BlockSpec((tb, tp, C_in), lambda b, p: (b, p, 0)),   # x
                const(w1k), const(b1k),
                const(w2k), const(b2k),
                const(w3k), const(b3k),
                const(wpk), const(bpk),
            ],
            out_specs=pl.BlockSpec((1, tb, out_channels),
                                   lambda b, p: (b, 0, 0)),
            scratch_shapes=[pltpu.VMEM((tb, BLOCK_CHANNELS[-1]), epi_dtype)],
        ),
        compiler_params=pltpu.CompilerParams(
            dimension_semantics=("parallel", "arbitrary"),
            vmem_limit_bytes=vmem_limit,
        ),
        cost_estimate=pl.CostEstimate(flops=flops, transcendentals=0,
                                      bytes_accessed=bytes_accessed),
    )(x, w1k, b1k, w2k, b2k, w3k, b3k, wpk, bpk)

    return out3.reshape(b_pad, out_channels)[:B]


def init_params(key, in_channels=3, out_channels=1024):
    """Deterministic synthetic parameters with the module's shapes.

    Weights stored as (in, out) (PyTorch (out, in) transposed); biases stored as
    (1, out) for lane-friendly layout — a real-weight port must transpose/reshape.
    """
    block_channel = list(BLOCK_CHANNELS)
    dims = [in_channels] + block_channel
    keys = jax.random.split(key, 8)
    params = []
    ki = 0
    for i in range(3):
        fan_in, fan_out = dims[i], dims[i + 1]
        scale = 1.0 / jnp.sqrt(fan_in)
        w = jax.random.uniform(keys[ki], (fan_in, fan_out), jnp.float32, -scale, scale)
        b = jax.random.uniform(keys[ki + 1], (1, fan_out), jnp.float32, -scale, scale)
        params += [w, b]
        ki += 2
    fan_in = block_channel[-1]
    scale = 1.0 / jnp.sqrt(fan_in)
    wp = jax.random.uniform(keys[ki], (fan_in, out_channels), jnp.float32, -scale, scale)
    bp = jax.random.uniform(keys[ki + 1], (1, out_channels), jnp.float32, -scale, scale)
    params += [wp, bp]
    return tuple(params)


def reference_forward(x, params):
    """Pure-JAX f32 reference of the module forward (defaults)."""
    w1, b1, w2, b2, w3, b3, wp, bp = params
    h = jnp.maximum(x @ w1 + b1, 0.0)
    h = jnp.maximum(h @ w2 + b2, 0.0)
    h = jnp.maximum(h @ w3 + b3, 0.0)
    g = jnp.max(h, axis=1)           # (B, 256)
    return g @ wp + bp[0]            # (B, out_channels)


if __name__ == "__main__":
    key = jax.random.PRNGKey(0)
    k_x1, k_x2, k_p = jax.random.split(key, 3)

    out_channels = 1024
    params = init_params(k_p, in_channels=3, out_channels=out_channels)

    # Case 1: small shape; single point chunk, batch split into 2 grid steps.
    B1, N1 = 2, 64
    x1 = jax.random.normal(k_x1, (B1, N1, 3), dtype=jnp.float32)
    out1 = jax.block_until_ready(dp3_pointnet_encoder_xyz(x1, params))
    ref1 = reference_forward(x1, params)
    assert out1.shape == (B1, out_channels), out1.shape
    err1 = float(jnp.max(jnp.abs(out1 - ref1)))
    scale1 = float(jnp.max(jnp.abs(ref1))) + 1e-6
    # bf16 MXU matmuls (f32 accumulate) -> loosened bound vs. the f32 reference.
    assert err1 <= 0.05 * scale1, (err1, scale1)

    # Case 2: odd batch + point count that doesn't divide the chunk: exercises
    # the running-max accumulation across point chunks and both padding paths.
    B2, N2 = 3, 200
    x2 = jax.random.normal(k_x2, (B2, N2, 3), dtype=jnp.float32)
    out2 = jax.block_until_ready(
        dp3_pointnet_encoder_xyz(x2, params, target_rows=128))
    ref2 = reference_forward(x2, params)
    assert out2.shape == (B2, out_channels), out2.shape
    err2 = float(jnp.max(jnp.abs(out2 - ref2)))
    scale2 = float(jnp.max(jnp.abs(ref2))) + 1e-6
    assert err2 <= 0.05 * scale2, (err2, scale2)

    print("KERNEL_OK")
</pallas_src>

<mosaic_0001>
module attributes {stable_mosaic.version = 11 : i64} {
  func.func @_pointnet_kernel(%arg0: i32, %arg1: i32, %arg2: memref<1x64x3xf32, #tpu.memory_space<vmem>>, %arg3: memref<3x64xf32, #tpu.memory_space<vmem>>, %arg4: memref<1x64xf32, #tpu.memory_space<vmem>>, %arg5: memref<64x128xbf16, #tpu.memory_space<vmem>>, %arg6: memref<1x128xf32, #tpu.memory_space<vmem>>, %arg7: memref<128x256xbf16, #tpu.memory_space<vmem>>, %arg8: memref<1x256xf32, #tpu.memory_space<vmem>>, %arg9: memref<256x1024xbf16, #tpu.memory_space<vmem>>, %arg10: memref<1x1024xf32, #tpu.memory_space<vmem>>, %arg11: memref<1x1x1024xf32, #tpu.memory_space<vmem>>, %arg12: memref<1x256xf32, #tpu.memory_space<vmem>>) attributes {dimension_semantics = [#tpu.dimension_semantics<parallel>, #tpu.dimension_semantics<arbitrary>], iteration_bounds = array<i64: 2, 1>, scalar_prefetch = 0 : i64, scratch_operands = 1 : i64, tpu.core_type = #tpu.core_type<tc>, window_params = [{transform_indices = @transform_0, window_bounds = array<i64: 1, 64, 3>}, {pipeline_mode = #tpu.pipeline_mode<synchronous>, transform_indices = @transform_1, window_bounds = array<i64: 3, 64>}, {pipeline_mode = #tpu.pipeline_mode<synchronous>, transform_indices = @transform_2, window_bounds = array<i64: 1, 64>}, {pipeline_mode = #tpu.pipeline_mode<synchronous>, transform_indices = @transform_3, window_bounds = array<i64: 64, 128>}, {pipeline_mode = #tpu.pipeline_mode<synchronous>, transform_indices = @transform_4, window_bounds = array<i64: 1, 128>}, {pipeline_mode = #tpu.pipeline_mode<synchronous>, transform_indices = @transform_5, window_bounds = array<i64: 128, 256>}, {pipeline_mode = #tpu.pipeline_mode<synchronous>, transform_indices = @transform_6, window_bounds = array<i64: 1, 256>}, {pipeline_mode = #tpu.pipeline_mode<synchronous>, transform_indices = @transform_7, window_bounds = array<i64: 256, 1024>}, {pipeline_mode = #tpu.pipeline_mode<synchronous>, transform_indices = @transform_8, window_bounds = array<i64: 1, 1024>}, {transform_indices = @transform_9, window_bounds = array<i64: 1, 1, 1024>}]} {
    %c0 = arith.constant 0 : index
    %c0_0 = arith.constant 0 : index
    %c0_1 = arith.constant 0 : index
    %0 = vector.load %arg2[%c0, %c0_0, %c0_1] : memref<1x64x3xf32, #tpu.memory_space<vmem>>, vector<1x64x3xf32>
    %1 = vector.shape_cast %0 : vector<1x64x3xf32> to vector<64x3xf32>
    %c0_2 = arith.constant 0 : index
    %c0_3 = arith.constant 0 : index
    %2 = vector.load %arg3[%c0_2, %c0_3] : memref<3x64xf32, #tpu.memory_space<vmem>>, vector<3x64xf32>
    %3 = vector.extract_strided_slice %1 {offsets = [0, 0], sizes = [64, 1], strides = [1, 1]} : vector<64x3xf32> to vector<64x1xf32>
    %4 = vector.extract_strided_slice %2 {offsets = [0, 0], sizes = [1, 64], strides = [1, 1]} : vector<3x64xf32> to vector<1x64xf32>
    %5 = vector.broadcast %3 : vector<64x1xf32> to vector<64x64xf32>
    %6 = vector.broadcast %4 : vector<1x64xf32> to vector<64x64xf32>
    %7 = arith.mulf %5, %6 : vector<64x64xf32>
    %8 = vector.extract_strided_slice %1 {offsets = [0, 1], sizes = [64, 1], strides = [1, 1]} : vector<64x3xf32> to vector<64x1xf32>
    %9 = vector.extract_strided_slice %2 {offsets = [1, 0], sizes = [1, 64], strides = [1, 1]} : vector<3x64xf32> to vector<1x64xf32>
    %10 = vector.broadcast %8 : vector<64x1xf32> to vector<64x64xf32>
    %11 = vector.broadcast %9 : vector<1x64xf32> to vector<64x64xf32>
    %12 = arith.mulf %10, %11 : vector<64x64xf32>
    %13 = arith.addf %7, %12 : vector<64x64xf32>
    %14 = vector.extract_strided_slice %1 {offsets = [0, 2], sizes = [64, 1], strides = [1, 1]} : vector<64x3xf32> to vector<64x1xf32>
    %15 = vector.extract_strided_slice %2 {offsets = [2, 0], sizes = [1, 64], strides = [1, 1]} : vector<3x64xf32> to vector<1x64xf32>
    %16 = vector.broadcast %14 : vector<64x1xf32> to vector<64x64xf32>
    %17 = vector.broadcast %15 : vector<1x64xf32> to vector<64x64xf32>
    %18 = arith.mulf %16, %17 : vector<64x64xf32>
    %19 = arith.addf %13, %18 : vector<64x64xf32>
    %c0_4 = arith.constant 0 : index
    %c0_5 = arith.constant 0 : index
    %20 = vector.load %arg4[%c0_4, %c0_5] : memref<1x64xf32, #tpu.memory_space<vmem>>, vector<1x64xf32>
    %21 = vector.broadcast %20 : vector<1x64xf32> to vector<64x64xf32>
    %22 = arith.addf %19, %21 : vector<64x64xf32>
    %cst = arith.constant 0.000000e+00 : f32
    %23 = vector.broadcast %cst : f32 to vector<64x64xf32>
    %24 = arith.maximumf %22, %23 : vector<64x64xf32>
    %25 = arith.truncf %24 : vector<64x64xf32> to vector<64x64xbf16>
    %c0_6 = arith.constant 0 : index
    %c0_7 = arith.constant 0 : index
    %26 = vector.load %arg5[%c0_6, %c0_7] : memref<64x128xbf16, #tpu.memory_space<vmem>>, vector<64x128xbf16>
    %cst_8 = arith.constant dense<0.000000e+00> : vector<64x128xf32>
    %27 = tpu.matmul %25, %26, %cst_8 {dimension_numbers = #tpu.dot_dimension_numbers<[1], [0], [0], [1], [0, 0, 1, 1], [], []>} : vector<64x64xbf16>, vector<64x128xbf16>, vector<64x128xf32> -> vector<64x128xf32>
    %c0_9 = arith.constant 0 : index
    %c0_10 = arith.constant 0 : index
    %28 = vector.load %arg6[%c0_9, %c0_10] : memref<1x128xf32, #tpu.memory_space<vmem>>, vector<1x128xf32>
    %29 = vector.broadcast %28 : vector<1x128xf32> to vector<64x128xf32>
    %30 = arith.addf %27, %29 : vector<64x128xf32>
    %cst_11 = arith.constant 0.000000e+00 : f32
    %31 = vector.broadcast %cst_11 : f32 to vector<64x128xf32>
    %32 = arith.maximumf %30, %31 : vector<64x128xf32>
    %33 = arith.truncf %32 : vector<64x128xf32> to vector<64x128xbf16>
    %c0_12 = arith.constant 0 : index
    %c0_13 = arith.constant 0 : index
    %34 = vector.load %arg7[%c0_12, %c0_13] : memref<128x256xbf16, #tpu.memory_space<vmem>>, vector<128x256xbf16>
    %cst_14 = arith.constant dense<0.000000e+00> : vector<64x256xf32>
    %35 = tpu.matmul %33, %34, %cst_14 {dimension_numbers = #tpu.dot_dimension_numbers<[1], [0], [0], [1], [0, 0, 1, 1], [], []>} : vector<64x128xbf16>, vector<128x256xbf16>, vector<64x256xf32> -> vector<64x256xf32>
    %c0_15 = arith.constant 0 : index
    %c0_16 = arith.constant 0 : index
    %36 = vector.load %arg8[%c0_15, %c0_16] : memref<1x256xf32, #tpu.memory_space<vmem>>, vector<1x256xf32>
    %37 = vector.broadcast %36 : vector<1x256xf32> to vector<64x256xf32>
    %38 = arith.addf %35, %37 : vector<64x256xf32>
    %cst_17 = arith.constant 0.000000e+00 : f32
    %39 = vector.broadcast %cst_17 : f32 to vector<64x256xf32>
    %40 = arith.maximumf %38, %39 : vector<64x256xf32>
    %41 = vector.shape_cast %40 : vector<64x256xf32> to vector<1x64x256xf32>
    %cst_18 = arith.constant dense<0xFF800000> : vector<1x256xf32>
    %42 = vector.multi_reduction <maximumf>, %41, %cst_18 [1] : vector<1x64x256xf32> to vector<1x256xf32>
    %c0_i32 = arith.constant 0 : i32
    %43 = arith.cmpi eq, %arg1, %c0_i32 : i32
    %44 = arith.extui %43 : i1 to i32
    %c0_i32_19 = arith.constant 0 : i32
    %45 = arith.cmpi ne, %44, %c0_i32_19 : i32
    scf.if %45 {
      %c0_24 = arith.constant 0 : index
      %c0_25 = arith.constant 0 : index
      %52 = vector.load %arg12[%c0_24, %c0_25] : memref<1x256xf32, #tpu.memory_space<vmem>>, vector<1x256xf32>
      tpu.vector_store %arg12[%c0_24, %c0_25], %42 {strides = array<i32>} : memref<1x256xf32, #tpu.memory_space<vmem>>, vector<1x256xf32>,
    } else {
    }
    %c0_i32_20 = arith.constant 0 : i32
    %46 = arith.cmpi sgt, %arg1, %c0_i32_20 : i32
    %47 = arith.extui %46 : i1 to i32
    %c0_i32_21 = arith.constant 0 : i32
    %48 = arith.cmpi ne, %47, %c0_i32_21 : i32
    scf.if %48 {
      %c0_24 = arith.constant 0 : index
      %c0_25 = arith.constant 0 : index
      %52 = vector.load %arg12[%c0_24, %c0_25] : memref<1x256xf32, #tpu.memory_space<vmem>>, vector<1x256xf32>
      %53 = arith.maximumf %52, %42 : vector<1x256xf32>
      %c0_26 = arith.constant 0 : index
      %c0_27 = arith.constant 0 : index
      %54 = vector.load %arg12[%c0_26, %c0_27] : memref<1x256xf32, #tpu.memory_space<vmem>>, vector<1x256xf32>
      tpu.vector_store %arg12[%c0_26, %c0_27], %53 {strides = array<i32>} : memref<1x256xf32, #tpu.memory_space<vmem>>, vector<1x256xf32>,
    } else {
    }
    %c0_i32_22 = arith.constant 0 : i32
    %49 = arith.cmpi eq, %arg1, %c0_i32_22 : i32
    %50 = arith.extui %49 : i1 to i32
    %c0_i32_23 = arith.constant 0 : i32
    %51 = arith.cmpi ne, %50, %c0_i32_23 : i32
    scf.if %51 {
      %c0_24 = arith.constant 0 : index
      %c0_25 = arith.constant 0 : index
      %52 = vector.load %arg12[%c0_24, %c0_25] : memref<1x256xf32, #tpu.memory_space<vmem>>, vector<1x256xf32>
      %53 = arith.truncf %52 : vector<1x256xf32> to vector<1x256xbf16>
      %c0_26 = arith.constant 0 : index
      %c0_27 = arith.constant 0 : index
      %54 = vector.load %arg9[%c0_26, %c0_27] : memref<256x1024xbf16, #tpu.memory_space<vmem>>, vector<256x1024xbf16>
      %cst_28 = arith.constant dense<0.000000e+00> : vector<1x1024xf32>
      %55 = tpu.matmul %53, %54, %cst_28 {dimension_numbers = #tpu.dot_dimension_numbers<[1], [0], [0], [1], [0, 0, 1, 1], [], []>} : vector<1x256xbf16>, vector<256x1024xbf16>, vector<1x1024xf32> -> vector<1x1024xf32>
      %c0_29 = arith.constant 0 : index
      %c0_30 = arith.constant 0 : index
      %56 = vector.load %arg10[%c0_29, %c0_30] : memref<1x1024xf32, #tpu.memory_space<vmem>>, vector<1x1024xf32>
      %57 = arith.addf %55, %56 : vector<1x1024xf32>
      %c0_31 = arith.constant 0 : index
      %c0_32 = arith.constant 0 : index
      %c0_33 = arith.constant 0 : index
      %58 = vector.load %arg11[%c0_31, %c0_32, %c0_33] : memref<1x1x1024xf32, #tpu.memory_space<vmem>>, vector<1x1x1024xf32>
      %59 = vector.shape_cast %58 : vector<1x1x1024xf32> to vector<1x1024xf32>
      %60 = vector.shape_cast %57 : vector<1x1024xf32> to vector<1x1x1024xf32>
      tpu.vector_store %arg11[%c0_31, %c0_32, %c0_33], %60 {strides = array<i32>} : memref<1x1x1024xf32, #tpu.memory_space<vmem>>, vector<1x1x1024xf32>,
    } else {
    }
    return
  }
  func.func @transform_0(%arg0: i32, %arg1: i32) -> (i32, i32, i32) {
    %c0_i32 = arith.constant 0 : i32
    %c0_i32_0 = arith.constant 0 : i32
    return %arg0, %arg1, %c0_i32 : i32, i32, i32
  }
  func.func @transform_1(%arg0: i32, %arg1: i32) -> (i32, i32) {
    %c0_i32 = arith.constant 0 : i32
    %c0_i32_0 = arith.constant 0 : i32
    %c0_i32_1 = arith.constant 0 : i32
    return %c0_i32, %c0_i32_0 : i32, i32
  }
  func.func @transform_2(%arg0: i32, %arg1: i32) -> (i32, i32) {
    %c0_i32 = arith.constant 0 : i32
    %c0_i32_0 = arith.constant 0 : i32
    %c0_i32_1 = arith.constant 0 : i32
    return %c0_i32, %c0_i32_0 : i32, i32
  }
  func.func @transform_3(%arg0: i32, %arg1: i32) -> (i32, i32) {
    %c0_i32 = arith.constant 0 : i32
    %c0_i32_0 = arith.constant 0 : i32
    %c0_i32_1 = arith.constant 0 : i32
    return %c0_i32, %c0_i32_0 : i32, i32
  }
  func.func @transform_4(%arg0: i32, %arg1: i32) -> (i32, i32) {
    %c0_i32 = arith.constant 0 : i32
    %c0_i32_0 = arith.constant 0 : i32
    %c0_i32_1 = arith.constant 0 : i32
    return %c0_i32, %c0_i32_0 : i32, i32
  }
  func.func @transform_5(%arg0: i32, %arg1: i32) -> (i32, i32) {
    %c0_i32 = arith.constant 0 : i32
    %c0_i32_0 = arith.constant 0 : i32
    %c0_i32_1 = arith.constant 0 : i32
    return %c0_i32, %c0_i32_0 : i32, i32
  }
  func.func @transform_6(%arg0: i32, %arg1: i32) -> (i32, i32) {
    %c0_i32 = arith.constant 0 : i32
    %c0_i32_0 = arith.constant 0 : i32
    %c0_i32_1 = arith.constant 0 : i32
    return %c0_i32, %c0_i32_0 : i32, i32
  }
  func.func @transform_7(%arg0: i32, %arg1: i32) -> (i32, i32) {
    %c0_i32 = arith.constant 0 : i32
    %c0_i32_0 = arith.constant 0 : i32
    %c0_i32_1 = arith.constant 0 : i32
    return %c0_i32, %c0_i32_0 : i32, i32
  }
  func.func @transform_8(%arg0: i32, %arg1: i32) -> (i32, i32) {
    %c0_i32 = arith.constant 0 : i32
    %c0_i32_0 = arith.constant 0 : i32
    %c0_i32_1 = arith.constant 0 : i32
    return %c0_i32, %c0_i32_0 : i32, i32
  }
  func.func @transform_9(%arg0: i32, %arg1: i32) -> (i32, i32, i32) {
    %c0_i32 = arith.constant 0 : i32
    %c0_i32_0 = arith.constant 0 : i32
    %c0_i32_1 = arith.constant 0 : i32
    return %arg0, %c0_i32, %c0_i32_0 : i32, i32, i32
  }
}

</mosaic_0001>

<llo_original>
// kernel: tpu_custom_call.1
$region0: #{tpu_custom_call.1}
  #allocation0 [shape = 'u32[]', space=smem, size = 0x4, offset = 0x4, fixed_abs, tag = 'smem constant byte address 0x4 - core index']
  #allocation1 [shape = 'u32[144,128]{1,0:T(1,128)}', space=vmem, size = 0x12000, scoped, tag = 'internal scratch']
  #allocation2 [shape = 'f32[1,256]{1,0:T(1,128)}', space=vmem, size = 0x400, scoped, tag = 'scratch operand']
  %s0 = inlined_call_operand.vmem [shape: f32[2,64,3], index: 0, kind: input, shape index: {}]
  %s1 = inlined_call_operand.vmem [shape: f32[3,64], index: 1, kind: input, shape index: {}]
  %s2 = inlined_call_operand.vmem [shape: f32[1,64], index: 2, kind: input, shape index: {}]
  %s3 = inlined_call_operand.hbm [shape: bf16[64,128], index: 3, kind: input, shape index: {}]
  %s4 = inlined_call_operand.vmem [shape: f32[1,128], index: 4, kind: input, shape index: {}]
  %s5 = inlined_call_operand.vmem [shape: bf16[128,256], index: 5, kind: input, shape index: {}]
  %s6 = inlined_call_operand.vmem [shape: f32[1,256], index: 6, kind: input, shape index: {}]
  %s7 = inlined_call_operand.hbm [shape: bf16[256,1024], index: 7, kind: input, shape index: {}]
  %s8 = inlined_call_operand.vmem [shape: f32[1,1024], index: 8, kind: input, shape index: {}]
  %s9 = inlined_call_operand.hbm [shape: f32[2,1,1024], index: 9, kind: output, shape index: {}]
  %s10 = sld [smem:[#allocation0]]
  $region89: #{tpu_custom_call.1} parent=0
    _
  %s12 = ssub.s32 1, %s10
  %s13 = scalar_select 0, %s12, %s10
  $region1: #{tpu_custom_call.1} parent=0
    #allocation3 [shape = 'u8[16384]{0}', space=vmem, size = 0x4000, scoped, tag = 'input window, operand 3, single buffered']
    #allocation4 [shape = 's32[2]{0}', space=sflag, size = 0x8, scoped, tag = 'scoped memory for tpu_custom_call.1']
    #allocation5 [shape = 's32[2]{0}', space=sflag, size = 0x8, scoped, tag = 'scoped memory for tpu_custom_call.1']
    #allocation6 [shape = 'u8[524288]{0}', space=vmem, size = 0x80000, scoped, tag = 'input window, operand 7, single buffered']
    #allocation7 [shape = 's32[1]{0}', space=sflag, size = 0x4, scoped, tag = 'scoped memory for tpu_custom_call.1']
    #allocation8 [shape = 'u8[8192]{0}', space=vmem, size = 0x2000, scoped, tag = 'output window, operand 0']
    %14 = vsyncpa [#allocation4], 0
    %15 = vsyncpa [#allocation7], 0
    %16 = vsyncpa [#allocation5], 0
    %s17 = scalar_lea.sflag [#allocation5], 1
    %18 = vsyncpa %s17, 0
    loop: start=0, step=1, limit=4
    $region2: #{tpu_custom_call.1} parent=1 // loop_pre_header
      _
    $region3: #{tpu_custom_call.1} parent=1 // loop_header
      %s20 = sphi 0, %s24
      %p21 = scmp.ge.s32.totalorder %s20, 4
      %s27 = sphi 0, %s39
      %s28 = sphi 0, %s35
      %s29 = sphi 0, %s27
      %s30 = sphi 0, %s28
      %s31 = sphi 0, %s29
      %s32 = sphi 0, %s30
      %s44 = sphi 0, %s46
      %s47 = sphi 0, %s44
      %s48 = sphi 0, %s47
      %s64 = sphi 0, %s48
      %s68 = sphi 0, %s68
      %s70 = sphi 0, %s68
      %s71 = sphi 0, %s70
      %s85 = sphi 0, %s71
      %s89 = sphi 0, %s89
      %s91 = sphi 0, %s89
      %s92 = sphi 0, %s91
      %s106 = sphi 0, %s92
      %s110 = sphi 0, %s110
      %s112 = sphi 0, %s110
      %s113 = sphi 0, %s112
      %s127 = sphi 0, %s113
      %s131 = sphi 0, %s131
      %s133 = sphi 0, %s131
      %s134 = sphi 0, %s133
      %s148 = sphi 0, %s134
      %s152 = sphi 0, %s152
      %s154 = sphi 0, %s152
      %s155 = sphi 0, %s154
      %s169 = sphi 0, %s155
      %s173 = sphi 0, %s173
      %s175 = sphi 0, %s173
      %s176 = sphi 0, %s175
      %s190 = sphi 0, %s176
      %s194 = sphi 0, %s194
      %s196 = sphi 0, %s194
      %s197 = sphi 0, %s196
      %s211 = sphi 0, %s197
      %s215 = sphi 0, %s215
      %s217 = sphi 0, %s215
      %s218 = sphi 0, %s217
      %s232 = sphi 0, %s218
      %s238 = sphi 0, %s240
      %s241 = sphi 0, %s238
      %s242 = sphi 0, %s241
      %s258 = sphi 0, %s242
    $region4: #{tpu_custom_call.1} parent=1 // loop_header_branch
      %23 = sbr.rel (%p21) target = $region8
    $region5: #{tpu_custom_call.1} parent=1 // loop_body
      %s25 = ssub.s32 %s20, 1
      %s26 = ssub.s32 %s20, 2
      %s33 = sadd.s32 1, %s28
      %p34 = scmp.ge.s32.totalorder %s33, 1
      %s35 = scalar_select %p34, 0, %s33
      %s36 = sadd.s32 1, %s27
      %s37 = scalar_select %p34, %s36, %s27
      %p38 = scmp.ge.s32.totalorder %s37, 2
      %s39 = scalar_select %p38, 0, %s37
      %s40 = ssub.s32 %s27, %s39
      %s41 = ssub.s32 %s28, %s35
      %s42 = sor.u32 %s40, %s41
      %p43 = scmp.eq.s32.totalorder %s42, 0
      %s45 = sadd.s32 %s44, 1
      %s46 = scalar_select %p43, %s44, %s45
      %p49 = pneg %p43
      %p50 = scmp.eq.s32.totalorder %s20, 1
      %p51 = por %p49, %p50
      %p52 = scmp.ne.s32.totalorder %s44, %s47
      %p53 = scmp.eq.s32.totalorder %s20, 0
      %p54 = por %p52, %p53
      %p55 = scmp.ne.s32.totalorder %s44, %s47
      %p56 = scmp.eq.s32.totalorder %s25, 1
      %p57 = por %p55, %p56
      %p58 = scmp.ne.s32.totalorder %s47, %s48
      %p59 = scmp.eq.s32.totalorder %s25, 0
      %p60 = por %p58, %p59
      %p61 = scmp.ne.s32.totalorder %s47, %s48
      %p62 = scmp.eq.s32.totalorder %s26, 1
      %p63 = por %p61, %p62
      %p65 = scmp.ne.s32.totalorder %s48, %s64
      %p66 = scmp.eq.s32.totalorder %s26, 0
      %p67 = por %p65, %p66
      %s69 = sadd.s32 %s68, 1
      %p72 = scmp.eq.s32.totalorder %s20, 1
      %p73 = scmp.ne.s32.totalorder %s68, %s70
      %p74 = scmp.eq.s32.totalorder %s20, 0
      %p75 = por %p73, %p74
      %p76 = scmp.ne.s32.totalorder %s68, %s70
      %p77 = scmp.eq.s32.totalorder %s25, 1
      %p78 = por %p76, %p77
      %p79 = scmp.ne.s32.totalorder %s70, %s71
      %p80 = scmp.eq.s32.totalorder %s25, 0
      %p81 = por %p79, %p80
      %p82 = scmp.ne.s32.totalorder %s70, %s71
      %p83 = scmp.eq.s32.totalorder %s26, 1
      %p84 = por %p82, %p83
      %p86 = scmp.ne.s32.totalorder %s71, %s85
      %p87 = scmp.eq.s32.totalorder %s26, 0
      %p88 = por %p86, %p87
      %s90 = sadd.s32 %s89, 1
      %p93 = scmp.eq.s32.totalorder %s20, 1
      %p94 = scmp.ne.s32.totalorder %s89, %s91
      %p95 = scmp.eq.s32.totalorder %s20, 0
      %p96 = por %p94, %p95
      %p97 = scmp.ne.s32.totalorder %s89, %s91
      %p98 = scmp.eq.s32.totalorder %s25, 1
      %p99 = por %p97, %p98
      %p100 = scmp.ne.s32.totalorder %s91, %s92
      %p101 = scmp.eq.s32.totalorder %s25, 0
      %p102 = por %p100, %p101
      %p103 = scmp.ne.s32.totalorder %s91, %s92
      %p104 = scmp.eq.s32.totalorder %s26, 1
      %p105 = por %p103, %p104
      %p107 = scmp.ne.s32.totalorder %s92, %s106
      %p108 = scmp.eq.s32.totalorder %s26, 0
      %p109 = por %p107, %p108
      %s111 = sadd.s32 %s110, 1
      %p114 = scmp.eq.s32.totalorder %s20, 1
      %p115 = scmp.ne.s32.totalorder %s110, %s112
      %p116 = scmp.eq.s32.totalorder %s20, 0
      %p117 = por %p115, %p116
      %p118 = scmp.ne.s32.totalorder %s110, %s112
      %p119 = scmp.eq.s32.totalorder %s25, 1
      %p120 = por %p118, %p119
      %p121 = scmp.ne.s32.totalorder %s112, %s113
      %p122 = scmp.eq.s32.totalorder %s25, 0
      %p123 = por %p121, %p122
      %p124 = scmp.ne.s32.totalorder %s112, %s113
      %p125 = scmp.eq.s32.totalorder %s26, 1
      %p126 = por %p124, %p125
      %p128 = scmp.ne.s32.totalorder %s113, %s127
      %p129 = scmp.eq.s32.totalorder %s26, 0
      %p130 = por %p128, %p129
      %s132 = sadd.s32 %s131, 1
      %p135 = scmp.eq.s32.totalorder %s20, 1
      %p136 = scmp.ne.s32.totalorder %s131, %s133
      %p137 = scmp.eq.s32.totalorder %s20, 0
      %p138 = por %p136, %p137
      %p139 = scmp.ne.s32.totalorder %s131, %s133
      %p140 = scmp.eq.s32.totalorder %s25, 1
      %p141 = por %p139, %p140
      %p142 = scmp.ne.s32.totalorder %s133, %s134
      %p143 = scmp.eq.s32.totalorder %s25, 0
      %p144 = por %p142, %p143
      %p145 = scmp.ne.s32.totalorder %s133, %s134
      %p146 = scmp.eq.s32.totalorder %s26, 1
      %p147 = por %p145, %p146
      %p149 = scmp.ne.s32.totalorder %s134, %s148
      %p150 = scmp.eq.s32.totalorder %s26, 0
      %p151 = por %p149, %p150
      %s153 = sadd.s32 %s152, 1
      %p156 = scmp.eq.s32.totalorder %s20, 1
      %p157 = scmp.ne.s32.totalorder %s152, %s154
      %p158 = scmp.eq.s32.totalorder %s20, 0
      %p159 = por %p157, %p158
      %p160 = scmp.ne.s32.totalorder %s152, %s154
      %p161 = scmp.eq.s32.totalorder %s25, 1
      %p162 = por %p160, %p161
      %p163 = scmp.ne.s32.totalorder %s154, %s155
      %p164 = scmp.eq.s32.totalorder %s25, 0
      %p165 = por %p163, %p164
      %p166 = scmp.ne.s32.totalorder %s154, %s155
      %p167 = scmp.eq.s32.totalorder %s26, 1
      %p168 = por %p166, %p167
      %p170 = scmp.ne.s32.totalorder %s155, %s169
      %p171 = scmp.eq.s32.totalorder %s26, 0
      %p172 = por %p170, %p171
      %s174 = sadd.s32 %s173, 1
      %p177 = scmp.eq.s32.totalorder %s20, 1
      %p178 = scmp.ne.s32.totalorder %s173, %s175
      %p179 = scmp.eq.s32.totalorder %s20, 0
      %p180 = por %p178, %p179
      %p181 = scmp.ne.s32.totalorder %s173, %s175
      %p182 = scmp.eq.s32.totalorder %s25, 1
      %p183 = por %p181, %p182
      %p184 = scmp.ne.s32.totalorder %s175, %s176
      %p185 = scmp.eq.s32.totalorder %s25, 0
      %p186 = por %p184, %p185
      %p187 = scmp.ne.s32.totalorder %s175, %s176
      %p188 = scmp.eq.s32.totalorder %s26, 1
      %p189 = por %p187, %p188
      %p191 = scmp.ne.s32.totalorder %s176, %s190
      %p192 = scmp.eq.s32.totalorder %s26, 0
      %p193 = por %p191, %p192
      %s195 = sadd.s32 %s194, 1
      %p198 = scmp.eq.s32.totalorder %s20, 1
      %p199 = scmp.ne.s32.totalorder %s194, %s196
      %p200 = scmp.eq.s32.totalorder %s20, 0
      %p201 = por %p199, %p200
      %p202 = scmp.ne.s32.totalorder %s194, %s196
      %p203 = scmp.eq.s32.totalorder %s25, 1
      %p204 = por %p202, %p203
      %p205 = scmp.ne.s32.totalorder %s196, %s197
      %p206 = scmp.eq.s32.totalorder %s25, 0
      %p207 = por %p205, %p206
      %p208 = scmp.ne.s32.totalorder %s196, %s197
      %p209 = scmp.eq.s32.totalorder %s26, 1
      %p210 = por %p208, %p209
      %p212 = scmp.ne.s32.totalorder %s197, %s211
      %p213 = scmp.eq.s32.totalorder %s26, 0
      %p214 = por %p212, %p213
      %s216 = sadd.s32 %s215, 1
      %p219 = scmp.eq.s32.totalorder %s20, 1
      %p220 = scmp.ne.s32.totalorder %s215, %s217
      %p221 = scmp.eq.s32.totalorder %s20, 0
      %p222 = por %p220, %p221
      %p223 = scmp.ne.s32.totalorder %s215, %s217
      %p224 = scmp.eq.s32.totalorder %s25, 1
      %p225 = por %p223, %p224
      %p226 = scmp.ne.s32.totalorder %s217, %s218
      %p227 = scmp.eq.s32.totalorder %s25, 0
      %p228 = por %p226, %p227
      %p229 = scmp.ne.s32.totalorder %s217, %s218
      %p230 = scmp.eq.s32.totalorder %s26, 1
      %p231 = por %p229, %p230
      %p233 = scmp.ne.s32.totalorder %s218, %s232
      %p234 = scmp.eq.s32.totalorder %s26, 0
      %p235 = por %p233, %p234
      %s236 = ssub.s32 %s27, %s39
      %p237 = scmp.eq.s32.totalorder %s236, 0
      %s239 = sadd.s32 %s238, 1
      %s240 = scalar_select %p237, %s238, %s239
      %p243 = pneg %p237
      %p244 = scmp.eq.s32.totalorder %s20, 1
      %p245 = por %p243, %p244
      %p246 = scmp.ne.s32.totalorder %s238, %s241
      %p247 = scmp.eq.s32.totalorder %s20, 0
      %p248 = por %p246, %p247
      %p249 = scmp.ne.s32.totalorder %s238, %s241
      %p250 = scmp.eq.s32.totalorder %s25, 1
      %p251 = por %p249, %p250
      %p252 = scmp.ne.s32.totalorder %s241, %s242
      %p253 = scmp.eq.s32.totalorder %s25, 0
      %p254 = por %p252, %p253
      %p255 = scmp.ne.s32.totalorder %s241, %s242
      %p256 = scmp.eq.s32.totalorder %s26, 1
      %p257 = por %p255, %p256
      %p259 = scmp.ne.s32.totalorder %s242, %s258
      %p260 = scmp.eq.s32.totalorder %s26, 0
      %p261 = por %p259, %p260
      %p262 = scmp.le.s32.totalorder 1, %s20
      %p263 = scmp.lt.s32.totalorder %s20, 3
      %p264 = pnand %p262, %p263
      %p265 = pneg %p264
      // Predicated region
      $region9: #{tpu_custom_call.1} parent=5 // pred_check
        _
      $region10: #{tpu_custom_call.1} parent=5 // pred_check_branch
        %267 = sbr.rel (%p264) target = $region12
      $region11: #{tpu_custom_call.1} parent=5 // pred_region
        %s268 = ssub.s32 %s20, 1
        // Predicated region
        $region13: #{tpu_custom_call.1} parent=11 // pred_check
          %p269 = pneg %p81
        $region14: #{tpu_custom_call.1} parent=11 // pred_check_branch
          %271 = sbr.rel (%p269) target = $region16
        $region15: #{tpu_custom_call.1} parent=11 // pred_region
          _
        $region16: #{tpu_custom_call.1} parent=11 // pred_fallthru
          _
        // Predicated region
        $region17: #{tpu_custom_call.1} parent=11 // pred_check
          %p272 = pneg %p102
        $region18: #{tpu_custom_call.1} parent=11 // pred_check_branch
          %274 = sbr.rel (%p272) target = $region20
        $region19: #{tpu_custom_call.1} parent=11 // pred_region
          _
        $region20: #{tpu_custom_call.1} parent=11 // pred_fallthru
          _
        // Predicated region
        $region21: #{tpu_custom_call.1} parent=11 // pred_check
          %p275 = pneg %p123
        $region22: #{tpu_custom_call.1} parent=11 // pred_check_branch
          %277 = sbr.rel (%p275) target = $region24
        $region23: #{tpu_custom_call.1} parent=11 // pred_region
          %s279 = ssub.s32 512, 512
          %280 = vsyncadd [#allocation4], %s279
          %s281 = sshll.u32 [#allocation3], 4
          %s282 = int_to_ptr.vmem [resolvable:$true] %s281
          %287 = dma.hbm_to_vmem [thread:$0]  %s3, 512, %s282, [#allocation4], 64, 64, 4
        $region24: #{tpu_custom_call.1} parent=11 // pred_fallthru
          _
        // Predicated region
        $region25: #{tpu_custom_call.1} parent=11 // pred_check
          %p288 = pneg %p144
        $region26: #{tpu_custom_call.1} parent=11 // pred_check_branch
          %290 = sbr.rel (%p288) target = $region28
        $region27: #{tpu_custom_call.1} parent=11 // pred_region
          _
        $region28: #{tpu_custom_call.1} parent=11 // pred_fallthru
          _
        // Predicated region
        $region29: #{tpu_custom_call.1} parent=11 // pred_check
          %p291 = pneg %p165
        $region30: #{tpu_custom_call.1} parent=11 // pred_check_branch
          %293 = sbr.rel (%p291) target = $region32
        $region31: #{tpu_custom_call.1} parent=11 // pred_region
          _
        $region32: #{tpu_custom_call.1} parent=11 // pred_fallthru
          _
        // Predicated region
        $region33: #{tpu_custom_call.1} parent=11 // pred_check
          %p294 = pneg %p186
        $region34: #{tpu_custom_call.1} parent=11 // pred_check_branch
          %296 = sbr.rel (%p294) target = $region36
        $region35: #{tpu_custom_call.1} parent=11 // pred_region
          _
        $region36: #{tpu_custom_call.1} parent=11 // pred_fallthru
          _
        // Predicated region
        $region37: #{tpu_custom_call.1} parent=11 // pred_check
          %p297 = pneg %p207
        $region38: #{tpu_custom_call.1} parent=11 // pred_check_branch
          %299 = sbr.rel (%p297) target = $region40
        $region39: #{tpu_custom_call.1} parent=11 // pred_region
          %s301 = ssub.s32 16384, 16384
          %302 = vsyncadd [#allocation7], %s301
          %s303 = sshll.u32 [#allocation6], 4
          %s304 = int_to_ptr.vmem [resolvable:$true] %s303
          %309 = dma.hbm_to_vmem [thread:$0]  %s7, 16384, %s304, [#allocation7], 512, 512, 32
        $region40: #{tpu_custom_call.1} parent=11 // pred_fallthru
          _
        // Predicated region
        $region41: #{tpu_custom_call.1} parent=11 // pred_check
          %p310 = pneg %p228
        $region42: #{tpu_custom_call.1} parent=11 // pred_check_branch
          %312 = sbr.rel (%p310) target = $region44
        $region43: #{tpu_custom_call.1} parent=11 // pred_region
          _
        $region44: #{tpu_custom_call.1} parent=11 // pred_fallthru
          _
      $region12: #{tpu_custom_call.1} parent=5 // pred_fallthru
        _
      %p313 = scmp.lt.s32.totalorder %s20, 2
      // Predicated region
      $region45: #{tpu_custom_call.1} parent=5 // pred_check
        %p314 = pneg %p313
      $region46: #{tpu_custom_call.1} parent=5 // pred_check_branch
        %316 = sbr.rel (%p314) target = $region48
      $region47: #{tpu_custom_call.1} parent=5 // pred_region
        // Predicated region
        $region49: #{tpu_custom_call.1} parent=47 // pred_check
          %p317 = pneg %p54
        $region50: #{tpu_custom_call.1} parent=47 // pred_check_branch
          %319 = sbr.rel (%p317) target = $region52
        $region51: #{tpu_custom_call.1} parent=47 // pred_region
          %s320 = smul.u32 8, %s28
          %p321 = scmp.lt.s32.totalorder %s27, 1
          %s322 = scalar_select %p321, %s27, 1
          %p323 = scmp.lt.s32.totalorder %s320, 7
          %s324 = scalar_select %p323, %s320, 7
          %s325 = smul.addr %s322, 8
          %s326 = sadd.s32 %s324, %s325
          %s327 = smul.addr %s326, 8
          %s328 = scalar_lea.vmem %s0, %s327
          %s329 = smul.u32 8, %s28
        $region52: #{tpu_custom_call.1} parent=47 // pred_fallthru
          _
      $region48: #{tpu_custom_call.1} parent=5 // pred_fallthru
        _
      %p330 = scmp.le.s32.totalorder 1, %s20
      %p331 = scmp.lt.s32.totalorder %s20, 3
      %p332 = pnand %p330, %p331
      %p333 = pneg %p332
      // Predicated region
      $region53: #{tpu_custom_call.1} parent=5 // pred_check
        _
      $region54: #{tpu_custom_call.1} parent=5 // pred_check_branch
        %335 = sbr.rel (%p332) target = $region56
      $region55: #{tpu_custom_call.1} parent=5 // pred_region
        %s336 = ssub.s32 %s20, 1
        // Predicated region
        $region57: #{tpu_custom_call.1} parent=55 // pred_check
          %p337 = pneg %p123
        $region58: #{tpu_custom_call.1} parent=55 // pred_check_branch
          %339 = sbr.rel (%p337) target = $region60
        $region59: #{tpu_custom_call.1} parent=55 // pred_region
          %340 = dma.done [#allocation4], 512
        $region60: #{tpu_custom_call.1} parent=55 // pred_fallthru
          _
        // Predicated region
        $region61: #{tpu_custom_call.1} parent=55 // pred_check
          %p341 = pneg %p207
        $region62: #{tpu_custom_call.1} parent=55 // pred_check_branch
          %343 = sbr.rel (%p341) target = $region64
        $region63: #{tpu_custom_call.1} parent=55 // pred_region
          %344 = dma.done [#allocation7], 16384
        $region64: #{tpu_custom_call.1} parent=55 // pred_fallthru
          _
        %s345 = smul.u32 8, %s30
        %p346 = scmp.lt.s32.totalorder %s29, 1
        %s347 = scalar_select %p346, %s29, 1
        %p348 = scmp.lt.s32.totalorder %s345, 7
        %s349 = scalar_select %p348, %s345, 7
        %s350 = smul.addr %s347, 8
        %s351 = sadd.s32 %s349, %s350
        %s352 = smul.addr %s351, 8
        %s353 = scalar_lea.vmem %s0, %s352
        %p354 = pneg %p60
        %p355 = pneg %p57
        %p356 = pneg %p81
        %p357 = pneg %p78
        %p358 = pneg %p102
        %p359 = pneg %p99
        %p360 = pneg %p123
        %p361 = pneg %p120
        %p362 = pneg %p144
        %p363 = pneg %p141
        %p364 = pneg %p165
        %p365 = pneg %p162
        %p366 = pneg %p186
        %p367 = pneg %p183
        %p368 = pneg %p207
        %p369 = pneg %p204
        %p370 = pneg %p228
        %p371 = pneg %p225
        %p372 = pneg %p254
        %p373 = pneg %p251
        %s374 = sand.u32 %s241, 1
        %s375 = scalar_lea.sflag [#allocation5], %s374
        %s376 = sand.u32 %s241, 1
        %s377 = smul.addr %s376, 8
        %s378 = scalar_lea.vmem [#allocation8], %s377
        %s379 = smul.u32 8, %s30
        %p380 = scmp.lt.s32.totalorder %s29, 1
        %s381 = scalar_select %p380, %s29, 1
        %p382 = scmp.lt.s32.totalorder %s379, 7
        %s383 = scalar_select %p382, %s379, 7
        %s384 = smul.addr %s381, 8
        %s385 = sadd.s32 %s383, %s384
        %s386 = smul.addr %s385, 8
        %s387 = scalar_lea.vmem %s0, %s386
        %s388 = smul.u32 8, %s30
        %v390 = vld [vmem:[%s387] sm:$0xff]
        %v391 = vld [vmem:[%s387 + $0x8] sm:$0xff]
        %v392 = vld [vmem:[%s387 + $0x10] sm:$0xff]
        %v393 = vld [vmem:[%s387 + $0x18] sm:$0xff]
        %v394 = vld [vmem:[%s387 + $0x20] sm:$0xff]
        %v395 = vld [vmem:[%s387 + $0x28] sm:$0xff]
        %v396 = vld [vmem:[%s387 + $0x30] sm:$0xff]
        %v397 = vld [vmem:[%s387 + $0x38] sm:$0xff]
        %v398 = vld [vmem:[%s1] sm:$0x7]
        %400 = vset.pattern.permute.xlu0 0
        %401 = vperm.xlu0 %400, %v390
        %v402 = vpop.permute.xlu0 %401
        %405 = vset.pattern.permute.xlu0 0
        %406 = vperm.xlu0 %405, %v391
        %v407 = vpop.permute.xlu0 %406
        %410 = vset.pattern.permute.xlu0 0
        %411 = vperm.xlu0 %410, %v392
        %v412 = vpop.permute.xlu0 %411
        %415 = vset.pattern.permute.xlu0 0
        %416 = vperm.xlu0 %415, %v393
        %v417 = vpop.permute.xlu0 %416
        %420 = vset.pattern.permute.xlu0 0
        %421 = vperm.xlu0 %420, %v394
        %v422 = vpop.permute.xlu0 %421
        %425 = vset.pattern.permute.xlu0 0
        %426 = vperm.xlu0 %425, %v395
        %v427 = vpop.permute.xlu0 %426
        %430 = vset.pattern.permute.xlu0 0
        %431 = vperm.xlu0 %430, %v396
        %v432 = vpop.permute.xlu0 %431
        %435 = vset.pattern.permute.xlu0 0
        %436 = vperm.xlu0 %435, %v397
        %v437 = vpop.permute.xlu0 %436
        %v439 = vlaneseq
        %v440 = vshrl.u32 %v439, 7
        %v441 = vsub.s32 0, %v440
        %v442 = vrot.slane %v398, %v441
        %v443 = vmul.f32 %v402, %v442
        %v444 = vmul.f32 %v407, %v442
        %v445 = vmul.f32 %v412, %v442
        %v446 = vmul.f32 %v417, %v442
        %v447 = vmul.f32 %v422, %v442
        %v448 = vmul.f32 %v427, %v442
        %v449 = vmul.f32 %v432, %v442
        %v450 = vmul.f32 %v437, %v442
        %451 = vset.pattern.permute.xlu0 1
        %452 = vperm.xlu0 %451, %v390
        %v453 = vpop.permute.xlu0 %452
        %455 = vset.pattern.permute.xlu0 1
        %456 = vperm.xlu0 %455, %v391
        %v457 = vpop.permute.xlu0 %456
        %459 = vset.pattern.permute.xlu0 1
        %460 = vperm.xlu0 %459, %v392
        %v461 = vpop.permute.xlu0 %460
        %463 = vset.pattern.permute.xlu0 1
        %464 = vperm.xlu0 %463, %v393
        %v465 = vpop.permute.xlu0 %464
        %467 = vset.pattern.permute.xlu0 1
        %468 = vperm.xlu0 %467, %v394
        %v469 = vpop.permute.xlu0 %468
        %471 = vset.pattern.permute.xlu0 1
        %472 = vperm.xlu0 %471, %v395
        %v473 = vpop.permute.xlu0 %472
        %475 = vset.pattern.permute.xlu0 1
        %476 = vperm.xlu0 %475, %v396
        %v477 = vpop.permute.xlu0 %476
        %479 = vset.pattern.permute.xlu0 1
        %480 = vperm.xlu0 %479, %v397
        %v481 = vpop.permute.xlu0 %480
        %v483 = vlaneseq
        %v484 = vshrl.u32 %v483, 7
        %v485 = vsub.s32 1, %v484
        %v486 = vrot.slane %v398, %v485
        %v487 = vmul.f32 %v453, %v486
        %v488 = vmul.f32 %v457, %v486
        %v489 = vmul.f32 %v461, %v486
        %v490 = vmul.f32 %v465, %v486
        %v491 = vmul.f32 %v469, %v486
        %v492 = vmul.f32 %v473, %v486
        %v493 = vmul.f32 %v477, %v486
        %v494 = vmul.f32 %v481, %v486
        %v495 = vadd.f32 %v443, %v487
        %v496 = vadd.f32 %v444, %v488
        %v497 = vadd.f32 %v445, %v489
        %v498 = vadd.f32 %v446, %v490
        %v499 = vadd.f32 %v447, %v491
        %v500 = vadd.f32 %v448, %v492
        %v501 = vadd.f32 %v449, %v493
        %v502 = vadd.f32 %v450, %v494
        %503 = vset.pattern.permute.xlu0 2
        %504 = vperm.xlu0 %503, %v390
        %v505 = vpop.permute.xlu0 %504
        %507 = vset.pattern.permute.xlu0 2
        %508 = vperm.xlu0 %507, %v391
        %v509 = vpop.permute.xlu0 %508
        %511 = vset.pattern.permute.xlu0 2
        %512 = vperm.xlu0 %511, %v392
        %v513 = vpop.permute.xlu0 %512
        %515 = vset.pattern.permute.xlu0 2
        %516 = vperm.xlu0 %515, %v393
        %v517 = vpop.permute.xlu0 %516
        %519 = vset.pattern.permute.xlu0 2
        %520 = vperm.xlu0 %519, %v394
        %v521 = vpop.permute.xlu0 %520
        %523 = vset.pattern.permute.xlu0 2
        %524 = vperm.xlu0 %523, %v395
        %v525 = vpop.permute.xlu0 %524
        %527 = vset.pattern.permute.xlu0 2
        %528 = vperm.xlu0 %527, %v396
        %v529 = vpop.permute.xlu0 %528
        %531 = vset.pattern.permute.xlu0 2
        %532 = vperm.xlu0 %531, %v397
        %v533 = vpop.permute.xlu0 %532
        %v535 = vlaneseq
        %v536 = vshrl.u32 %v535, 7
        %v537 = vsub.s32 2, %v536
        %v538 = vrot.slane %v398, %v537
        %v539 = vmul.f32 %v505, %v538
        %v540 = vmul.f32 %v509, %v538
        %v541 = vmul.f32 %v513, %v538
        %v542 = vmul.f32 %v517, %v538
        %v543 = vmul.f32 %v521, %v538
        %v544 = vmul.f32 %v525, %v538
        %v545 = vmul.f32 %v529, %v538
        %v546 = vmul.f32 %v533, %v538
        %v547 = vadd.f32 %v495, %v539
        %v548 = vadd.f32 %v496, %v540
        %v549 = vadd.f32 %v497, %v541
        %v550 = vadd.f32 %v498, %v542
        %v551 = vadd.f32 %v499, %v543
        %v552 = vadd.f32 %v500, %v544
        %v553 = vadd.f32 %v501, %v545
        %v554 = vadd.f32 %v502, %v546
        %v555 = vld [vmem:[%s2] sm:$0x1]
        %v557 = vlaneseq
        %v558 = vshrl.u32 %v557, 7
        %v559 = vsub.s32 0, %v558
        %v560 = vrot.slane %v555, %v559
        %v562 = vadd.f32 %v547, %v560
        %v563 = vadd.f32 %v548, %v560
        %v564 = vadd.f32 %v549, %v560
        %v565 = vadd.f32 %v550, %v560
        %v566 = vadd.f32 %v551, %v560
        %v567 = vadd.f32 %v552, %v560
        %v568 = vadd.f32 %v553, %v560
        %v569 = vadd.f32 %v554, %v560
        %v570 = vmax.f32 %v562, 0.0
        %v571 = vmax.f32 %v563, 0.0
        %v572 = vmax.f32 %v564, 0.0
        %v573 = vmax.f32 %v565, 0.0
        %v574 = vmax.f32 %v566, 0.0
        %v575 = vmax.f32 %v567, 0.0
        %v576 = vmax.f32 %v568, 0.0
        %v577 = vmax.f32 %v569, 0.0
        %v578 = vpack.c.bf16 %v571, %v570
        %v579 = vpack.c.bf16 %v573, %v572
        %v580 = vpack.c.bf16 %v575, %v574
        %v581 = vpack.c.bf16 %v577, %v576
        %v582 = vld [vmem:[#allocation3] sm:$0xf]
        %v583 = vld [vmem:[#allocation3 + $0x4] sm:$0xf]
        %v584 = vld [vmem:[#allocation3 + $0x8] sm:$0xf]
        %v585 = vld [vmem:[#allocation3 + $0xc] sm:$0xf]
        %v586 = vld [vmem:[#allocation3 + $0x10] sm:$0xf]
        %v587 = vld [vmem:[#allocation3 + $0x14] sm:$0xf]
        %v588 = vld [vmem:[#allocation3 + $0x18] sm:$0xf]
        %v589 = vld [vmem:[#allocation3 + $0x1c] sm:$0xf]
        %v590 = vld [vmem:[%s4] sm:$0x1]
        %v592 = vlaneseq
        %v593 = vshrl.u32 %v592, 7
        %v594 = vsub.s32 0, %v593
        %v595 = vrot.slane %v590, %v594
        %v605 = vunpack.c.l.b16 %v582
        %v606 = vunpack.c.l.b16 %v583
        %v607 = vunpack.c.l.b16 %v584
        %v608 = vunpack.c.l.b16 %v585
        %v609 = vunpack.c.l.b16 %v586
        %v610 = vunpack.c.l.b16 %v587
        %v611 = vunpack.c.l.b16 %v588
        %v612 = vunpack.c.l.b16 %v589
        %v613 = vpack.c.b16 %v606, %v605
        %v614 = vpack.c.b16 %v608, %v607
        %v615 = vpack.c.b16 %v610, %v609
        %v616 = vpack.c.b16 %v612, %v611
        %vm621 = vcmask 523264
        %v623 = vsel %vm621, %v578, 0
        %v626 = vsel %vm621, %v579, 0
        %v629 = vsel %vm621, %v580, 0
        %v632 = vsel %vm621, %v581, 0
        %634 = vmatprep.subr.bf16.mxu0 0
        %635 = vmatpush1.bf16.msra.mxu0 %v613
        %636 = vmatprep.subr.bf16.mxu0 0
        %637 = vmatpush1.bf16.msra.mxu0 %v614
        %638 = vmatprep.subr.bf16.mxu0 0
        %639 = vmatpush1.bf16.msra.mxu0 %v615
        %640 = vmatprep.subr.bf16.mxu0 0
        %641 = vmatpush1.bf16.msra.mxu0 %v616
        %642 = vmatprep.subr.bf16.mxu0 0
        %643 = vmatpush1.bf16.msra.mxu0 0
        %644 = vmatprep.subr.bf16.mxu0 0
        %645 = vmatpush1.bf16.msra.mxu0 0
        %646 = vmatprep.subr.bf16.mxu0 0
        %647 = vmatpush1.bf16.msra.mxu0 0
        %648 = vmatprep.subr.bf16.mxu0 0
        %649 = vmatpush1.bf16.msra.mxu0 0
        %650 = vmatprep.subr.bf16.mxu0 0
        %651 = vmatpush1.bf16.msra.mxu0 0
        %652 = vmatprep.subr.bf16.mxu0 0
        %653 = vmatpush1.bf16.msra.mxu0 0
        %654 = vmatprep.subr.bf16.mxu0 0
        %655 = vmatpush1.bf16.msra.mxu0 0
        %656 = vmatprep.subr.bf16.mxu0 0
        %657 = vmatpush1.bf16.msra.mxu0 0
        %658 = vmatprep.subr.bf16.mxu0 0
        %659 = vmatpush1.bf16.msra.mxu0 0
        %660 = vmatprep.subr.bf16.mxu0 0
        %661 = vmatpush1.bf16.msra.mxu0 0
        %662 = vmatprep.subr.bf16.mxu0 0
        %663 = vmatpush1.bf16.msra.mxu0 0
        %664 = vmatprep.subr.bf16.mxu0 0
        %665 = vmatpush1.bf16.msra.mxu0 0
        %666 = vmatprep.mubr.bf16.mxu0 0
        %667 = vmatmul.mubr.bf16.gmra.mrb[0].mxu0 %v623
        %v668 = vpop.f32.mrb[0].mxu0
        %v669 = vadd.f32 %v595, %v668
        %v670 = vpop.f32.mrb[0].mxu0
        %v671 = vpop.f32.mrb[0].mxu0
        %v672 = vadd.f32 %v595, %v671
        %v673 = vpop.f32.mrb[0].mxu0
        %674 = vmatprep.mubr.bf16.mxu0 0
        %675 = vmatmul.mubr.bf16.gmra.mrb[0].mxu0 %v626
        %v676 = vpop.f32.mrb[0].mxu0
        %v677 = vadd.f32 %v595, %v676
        %v678 = vpop.f32.mrb[0].mxu0
        %v679 = vpop.f32.mrb[0].mxu0
        %v680 = vadd.f32 %v595, %v679
        %v681 = vpop.f32.mrb[0].mxu0
        %682 = vmatprep.mubr.bf16.mxu0 0
        %683 = vmatmul.mubr.bf16.gmra.mrb[0].mxu0 %v629
        %v684 = vpop.f32.mrb[0].mxu0
        %v685 = vadd.f32 %v595, %v684
        %v686 = vpop.f32.mrb[0].mxu0
        %v687 = vpop.f32.mrb[0].mxu0
        %v688 = vadd.f32 %v595, %v687
        %v689 = vpop.f32.mrb[0].mxu0
        %690 = vmatprep.mubr.bf16.mxu0 0
        %691 = vmatmul.mubr.bf16.gmra.mrb[0].mxu0 %v632
        %v692 = vpop.f32.mrb[0].mxu0
        %v693 = vadd.f32 %v595, %v692
        %v694 = vpop.f32.mrb[0].mxu0
        %v695 = vpop.f32.mrb[0].mxu0
        %v696 = vadd.f32 %v595, %v695
        %v697 = vpop.f32.mrb[0].mxu0
        %698 = vdwg.mxu0
        %v699 = vmax.f32 %v669, 0.0
        %v700 = vmax.f32 %v672, 0.0
        %v701 = vmax.f32 %v677, 0.0
        %v702 = vmax.f32 %v680, 0.0
        %v703 = vmax.f32 %v685, 0.0
        %v704 = vmax.f32 %v688, 0.0
        %v705 = vmax.f32 %v693, 0.0
        %v706 = vmax.f32 %v696, 0.0
        %v707 = vpack.c.bf16 %v700, %v699
        %v708 = vpack.c.bf16 %v702, %v701
        %v709 = vpack.c.bf16 %v704, %v703
        %v710 = vpack.c.bf16 %v706, %v705
        %v711 = vld [vmem:[%s5] sm:$0xff]
        %v712 = vld [vmem:[%s5 + $0x8] sm:$0xff]
        %v713 = vld [vmem:[%s5 + $0x10] sm:$0xff]
        %v714 = vld [vmem:[%s5 + $0x18] sm:$0xff]
        %v715 = vld [vmem:[%s5 + $0x20] sm:$0xff]
        %v716 = vld [vmem:[%s5 + $0x28] sm:$0xff]
        %v717 = vld [vmem:[%s5 + $0x30] sm:$0xff]
        %v718 = vld [vmem:[%s5 + $0x38] sm:$0xff]
        %v719 = vld [vmem:[%s5 + $0x40] sm:$0xff]
        %v720 = vld [vmem:[%s5 + $0x48] sm:$0xff]
        %v721 = vld [vmem:[%s5 + $0x50] sm:$0xff]
        %v722 = vld [vmem:[%s5 + $0x58] sm:$0xff]
        %v723 = vld [vmem:[%s5 + $0x60] sm:$0xff]
        %v724 = vld [vmem:[%s5 + $0x68] sm:$0xff]
        %v725 = vld [vmem:[%s5 + $0x70] sm:$0xff]
        %v726 = vld [vmem:[%s5 + $0x78] sm:$0xff]
        %v727 = vld [vmem:[%s6] sm:$0x3]
        %v729 = vlaneseq
        %v730 = vshrl.u32 %v729, 7
        %v731 = vsub.s32 0, %v730
        %v732 = vrot.slane %v727, %v731
        %v733 = vlaneseq
        %v734 = vshrl.u32 %v733, 7
        %v735 = vsub.s32 1, %v734
        %v736 = vrot.slane %v727, %v735
        %v755 = vunpack.c.l.b16 %v711
        %v756 = vunpack.c.h.b16 %v711
        %v757 = vunpack.c.l.b16 %v712
        %v758 = vunpack.c.h.b16 %v712
        %v759 = vunpack.c.l.b16 %v713
        %v760 = vunpack.c.h.b16 %v713
        %v761 = vunpack.c.l.b16 %v714
        %v762 = vunpack.c.h.b16 %v714
        %v763 = vunpack.c.l.b16 %v715
        %v764 = vunpack.c.h.b16 %v715
        %v765 = vunpack.c.l.b16 %v716
        %v766 = vunpack.c.h.b16 %v716
        %v767 = vunpack.c.l.b16 %v717
        %v768 = vunpack.c.h.b16 %v717
        %v769 = vunpack.c.l.b16 %v718
        %v770 = vunpack.c.h.b16 %v718
        %v771 = vunpack.c.l.b16 %v719
        %v772 = vunpack.c.h.b16 %v719
        %v773 = vunpack.c.l.b16 %v720
        %v774 = vunpack.c.h.b16 %v720
        %v775 = vunpack.c.l.b16 %v721
        %v776 = vunpack.c.h.b16 %v721
        %v777 = vunpack.c.l.b16 %v722
        %v778 = vunpack.c.h.b16 %v722
        %v779 = vunpack.c.l.b16 %v723
        %v780 = vunpack.c.h.b16 %v723
        %v781 = vunpack.c.l.b16 %v724
        %v782 = vunpack.c.h.b16 %v724
        %v783 = vunpack.c.l.b16 %v725
        %v784 = vunpack.c.h.b16 %v725
        %v785 = vunpack.c.l.b16 %v726
        %v786 = vunpack.c.h.b16 %v726
        %v787 = vpack.c.b16 %v757, %v755
        %v788 = vpack.c.b16 %v758, %v756
        %v789 = vpack.c.b16 %v761, %v759
        %v790 = vpack.c.b16 %v762, %v760
        %v791 = vpack.c.b16 %v765, %v763
        %v792 = vpack.c.b16 %v766, %v764
        %v793 = vpack.c.b16 %v769, %v767
        %v794 = vpack.c.b16 %v770, %v768
        %v795 = vpack.c.b16 %v773, %v771
        %v796 = vpack.c.b16 %v774, %v772
        %v797 = vpack.c.b16 %v777, %v775
        %v798 = vpack.c.b16 %v778, %v776
        %v799 = vpack.c.b16 %v781, %v779
        %v800 = vpack.c.b16 %v782, %v780
        %v801 = vpack.c.b16 %v785, %v783
        %v802 = vpack.c.b16 %v786, %v784
        %819 = vmatprep.subr.bf16.mxu0 %v788
        %820 = vmatpush1.bf16.msra.mxu0 %v787
        %821 = vmatprep.subr.bf16.mxu0 %v790
        %822 = vmatpush1.bf16.msra.mxu0 %v789
        %823 = vmatprep.subr.bf16.mxu0 %v792
        %824 = vmatpush1.bf16.msra.mxu0 %v791
        %825 = vmatprep.subr.bf16.mxu0 %v794
        %826 = vmatpush1.bf16.msra.mxu0 %v793
        %827 = vmatprep.subr.bf16.mxu0 %v796
        %828 = vmatpush1.bf16.msra.mxu0 %v795
        %829 = vmatprep.subr.bf16.mxu0 %v798
        %830 = vmatpush1.bf16.msra.mxu0 %v797
        %831 = vmatprep.subr.bf16.mxu0 %v800
        %832 = vmatpush1.bf16.msra.mxu0 %v799
        %833 = vmatprep.subr.bf16.mxu0 %v802
        %834 = vmatpush1.bf16.msra.mxu0 %v801
        %835 = vmatprep.subr.bf16.mxu0 0
        %836 = vmatpush1.bf16.msra.mxu0 0
        %837 = vmatprep.subr.bf16.mxu0 0
        %838 = vmatpush1.bf16.msra.mxu0 0
        %839 = vmatprep.subr.bf16.mxu0 0
        %840 = vmatpush1.bf16.msra.mxu0 0
        %841 = vmatprep.subr.bf16.mxu0 0
        %842 = vmatpush1.bf16.msra.mxu0 0
        %843 = vmatprep.subr.bf16.mxu0 0
        %844 = vmatpush1.bf16.msra.mxu0 0
        %845 = vmatprep.subr.bf16.mxu0 0
        %846 = vmatpush1.bf16.msra.mxu0 0
        %847 = vmatprep.subr.bf16.mxu0 0
        %848 = vmatpush1.bf16.msra.mxu0 0
        %849 = vmatprep.subr.bf16.mxu0 0
        %850 = vmatpush1.bf16.msra.mxu0 0
        %851 = vmatprep.mubr.bf16.mxu0 0
        %852 = vmatmul.mubr.bf16.gmra.mrb[0].mxu0 %v707
        %v853 = vpop.f32.mrb[0].mxu0
        %v854 = vadd.f32 %v732, %v853
        %v855 = vpop.f32.mrb[0].mxu0
        %v856 = vadd.f32 %v736, %v855
        %v857 = vpop.f32.mrb[0].mxu0
        %v858 = vadd.f32 %v732, %v857
        %v859 = vpop.f32.mrb[0].mxu0
        %v860 = vadd.f32 %v736, %v859
        %861 = vmatprep.mubr.bf16.mxu0 0
        %862 = vmatmul.mubr.bf16.gmra.mrb[0].mxu0 %v708
        %v863 = vpop.f32.mrb[0].mxu0
        %v864 = vadd.f32 %v732, %v863
        %v865 = vpop.f32.mrb[0].mxu0
        %v866 = vadd.f32 %v736, %v865
        %v867 = vpop.f32.mrb[0].mxu0
        %v868 = vadd.f32 %v732, %v867
        %v869 = vpop.f32.mrb[0].mxu0
        %v870 = vadd.f32 %v736, %v869
        %871 = vmatprep.mubr.bf16.mxu0 0
        %872 = vmatmul.mubr.bf16.gmra.mrb[0].mxu0 %v709
        %v873 = vpop.f32.mrb[0].mxu0
        %v874 = vadd.f32 %v732, %v873
        %v875 = vpop.f32.mrb[0].mxu0
        %v876 = vadd.f32 %v736, %v875
        %v877 = vpop.f32.mrb[0].mxu0
        %v878 = vadd.f32 %v732, %v877
        %v879 = vpop.f32.mrb[0].mxu0
        %v880 = vadd.f32 %v736, %v879
        %881 = vmatprep.mubr.bf16.mxu0 0
        %882 = vmatmul.mubr.bf16.gmra.mrb[0].mxu0 %v710
        %v883 = vpop.f32.mrb[0].mxu0
        %v884 = vadd.f32 %v732, %v883
        %v885 = vpop.f32.mrb[0].mxu0
        %v886 = vadd.f32 %v736, %v885
        %v887 = vpop.f32.mrb[0].mxu0
        %v888 = vadd.f32 %v732, %v887
        %v889 = vpop.f32.mrb[0].mxu0
        %v890 = vadd.f32 %v736, %v889
        %891 = vdwg.mxu0
        %v892 = vmax.f32 %v854, 0.0
        %v893 = vmax.f32 %v856, 0.0
        %v894 = vmax.f32 %v858, 0.0
        %v895 = vmax.f32 %v860, 0.0
        %v896 = vmax.f32 %v864, 0.0
        %v897 = vmax.f32 %v866, 0.0
        %v898 = vmax.f32 %v868, 0.0
        %v899 = vmax.f32 %v870, 0.0
        %v900 = vmax.f32 %v874, 0.0
        %v901 = vmax.f32 %v876, 0.0
        %v902 = vmax.f32 %v878, 0.0
        %v903 = vmax.f32 %v880, 0.0
        %v904 = vmax.f32 %v884, 0.0
        %v905 = vmax.f32 %v886, 0.0
        %v906 = vmax.f32 %v888, 0.0
        %v907 = vmax.f32 %v890, 0.0
        %v908 = vmax.f32 %v892, %v896
        %v909 = vmax.f32 %v894, %v898
        %v910 = vmax.f32 %v908, %v900
        %v911 = vmax.f32 %v909, %v902
        %v912 = vmax.f32 %v910, %v904
        %v913 = vmax.f32 %v911, %v906
        %v914 = vmax.f32 %v912, %v913
        %v915 = vrot.slane %v914, 4
        %v916 = vmax.f32 %v914, %v915
        %v917 = vrot.slane %v916, 2
        %v918 = vmax.f32 %v916, %v917
        %v919 = vrot.slane %v918, 1
        %v920 = vmax.f32 %v918, %v919
        %v921 = vmax.f32 %v893, %v897
        %v922 = vmax.f32 %v895, %v899
        %v923 = vmax.f32 %v921, %v901
        %v924 = vmax.f32 %v922, %v903
        %v925 = vmax.f32 %v923, %v905
        %v926 = vmax.f32 %v924, %v907
        %v927 = vmax.f32 %v925, %v926
        %v928 = vrot.slane %v927, 4
        %v929 = vmax.f32 %v927, %v928
        %v930 = vrot.slane %v929, 2
        %v931 = vmax.f32 %v929, %v930
        %v932 = vrot.slane %v931, 1
        %v933 = vmax.f32 %v931, %v932
        %p934 = scmp.eq.s32.totalorder %s30, 0
        // Predicated region
        $region65: #{tpu_custom_call.1} parent=55 // pred_check
          %p935 = pneg %p934
        $region66: #{tpu_custom_call.1} parent=55 // pred_check_branch
          %937 = sbr.rel (%p935) target = $region68
        $region67: #{tpu_custom_call.1} parent=55 // pred_region
          %v940 = vcombine.low %v920, %v933
          %v942 = vunpack.c.l.s4 1966171168
          %v943 = vunpack.c.0.s8 %v942
          %v944 = vlaneseq
          %v945 = vshrl.u32 %v944, 7
          %v946 = vsub.s32 %v943, %v945
          %v947 = vrot.slane %v940, %v946
          %v949 = vunpack.c.l.s4 1966171168
          %v950 = vunpack.c.0.s8 %v949
          %v951 = vlaneseq
          %v952 = vshrl.u32 %v951, 7
          %v953 = vsub.s32 %v950, %v952
          %v954 = vrot.slane %v947, %v953
          %v956 = vlaneseq
          %vm957 = vcmp.ge.s32.totalorder %v956, 0
          %vm958 = vcmp.lt.s32.totalorder %v956, 256
          %vm959 = vmand %vm957, %vm958
          %960 = vst.msk [vmem:[#allocation2] sm:$0x3] %vm959, %v954
        $region68: #{tpu_custom_call.1} parent=55 // pred_fallthru
          _
        %p961 = scmp.gt.s32.totalorder %s30, 0
        // Predicated region
        $region69: #{tpu_custom_call.1} parent=55 // pred_check
          %p962 = pneg %p961
        $region70: #{tpu_custom_call.1} parent=55 // pred_check_branch
          %964 = sbr.rel (%p962) target = $region72
        $region71: #{tpu_custom_call.1} parent=55 // pred_region
          %v965 = vld [vmem:[#allocation2] sm:$0x3]
          %v968 = vcombine.low %v920, %v933
          %v970 = vunpack.c.l.s4 1966171168
          %v971 = vunpack.c.0.s8 %v970
          %v972 = vlaneseq
          %v973 = vshrl.u32 %v972, 7
          %v974 = vsub.s32 %v971, %v973
          %v975 = vrot.slane %v968, %v974
          %v977 = vunpack.c.l.s4 1966171168
          %v978 = vunpack.c.0.s8 %v977
          %v979 = vlaneseq
          %v980 = vshrl.u32 %v979, 7
          %v981 = vsub.s32 %v978, %v980
          %v982 = vrot.slane %v975, %v981
          %v984 = vmax.f32 %v965, %v982
          %v985 = vlaneseq
          %vm986 = vcmp.ge.s32.totalorder %v985, 0
          %vm987 = vcmp.lt.s32.totalorder %v985, 256
          %vm988 = vmand %vm986, %vm987
          %989 = vst.msk [vmem:[#allocation2] sm:$0x3] %vm988, %v984
        $region72: #{tpu_custom_call.1} parent=55 // pred_fallthru
          _
        // Predicated region
        $region73: #{tpu_custom_call.1} parent=55 // pred_check
          %p990 = pneg %p934
        $region74: #{tpu_custom_call.1} parent=55 // pred_check_branch
          %992 = sbr.rel (%p990) target = $region76
        $region75: #{tpu_custom_call.1} parent=55 // pred_region
          %v993 = vld [vmem:[#allocation2] sm:$0x3]
          %v995 = vlaneseq
          %v996 = vshrl.u32 %v995, 7
          %v997 = vsub.s32 0, %v996
          %v998 = vrot.slane %v993, %v997
          %v999 = vlaneseq
          %v1000 = vshrl.u32 %v999, 7
          %v1001 = vsub.s32 1, %v1000
          %v1002 = vrot.slane %v993, %v1001
          %v1005 = vpack.c.bf16 %v998, %v998
          %v1006 = vpack.c.bf16 %v1002, %v1002
          %v1007 = vld [vmem:[#allocation6] sm:$0xff]
          %v1008 = vld [vmem:[#allocation6 + $0x8] sm:$0xff]
          %v1009 = vld [vmem:[#allocation6 + $0x10] sm:$0xff]
          %v1010 = vld [vmem:[#allocation6 + $0x18] sm:$0xff]
          %v1011 = vld [vmem:[#allocation6 + $0x20] sm:$0xff]
          %v1012 = vld [vmem:[#allocation6 + $0x28] sm:$0xff]
          %v1013 = vld [vmem:[#allocation6 + $0x30] sm:$0xff]
          %v1014 = vld [vmem:[#allocation6 + $0x38] sm:$0xff]
          %v1015 = vld [vmem:[#allocation6 + $0x40] sm:$0xff]
          %v1016 = vld [vmem:[#allocation6 + $0x48] sm:$0xff]
          %v1017 = vld [vmem:[#allocation6 + $0x50] sm:$0xff]
          %v1018 = vld [vmem:[#allocation6 + $0x58] sm:$0xff]
          %v1019 = vld [vmem:[#allocation6 + $0x60] sm:$0xff]
          %v1020 = vld [vmem:[#allocation6 + $0x68] sm:$0xff]
          %v1021 = vld [vmem:[#allocation6 + $0x70] sm:$0xff]
          %v1022 = vld [vmem:[#allocation6 + $0x78] sm:$0xff]
          %v1023 = vld [vmem:[#allocation6 + $0x80] sm:$0xff]
          %v1024 = vld [vmem:[#allocation6 + $0x88] sm:$0xff]
          %v1025 = vld [vmem:[#allocation6 + $0x90] sm:$0xff]
          %v1026 = vld [vmem:[#allocation6 + $0x98] sm:$0xff]
          %v1027 = vld [vmem:[#allocation6 + $0xa0] sm:$0xff]
          %v1028 = vld [vmem:[#allocation6 + $0xa8] sm:$0xff]
          %v1029 = vld [vmem:[#allocation6 + $0xb0] sm:$0xff]
          %v1030 = vld [vmem:[#allocation6 + $0xb8] sm:$0xff]
          %v1031 = vld [vmem:[#allocation6 + $0xc0] sm:$0xff]
          %v1032 = vld [vmem:[#allocation6 + $0xc8] sm:$0xff]
          %v1033 = vld [vmem:[#allocation6 + $0xd0] sm:$0xff]
          %v1034 = vld [vmem:[#allocation6 + $0xd8] sm:$0xff]
          %v1035 = vld [vmem:[#allocation6 + $0xe0] sm:$0xff]
          %v1036 = vld [vmem:[#allocation6 + $0xe8] sm:$0xff]
          %v1037 = vld [vmem:[#allocation6 + $0xf0] sm:$0xff]
          %v1038 = vld [vmem:[#allocation6 + $0xf8] sm:$0xff]
          %v1039 = vld [vmem:[#allocation6 + $0x100] sm:$0xff]
          %v1040 = vld [vmem:[#allocation6 + $0x108] sm:$0xff]
          %v1041 = vld [vmem:[#allocation6 + $0x110] sm:$0xff]
          %v1042 = vld [vmem:[#allocation6 + $0x118] sm:$0xff]
          %v1043 = vld [vmem:[#allocation6 + $0x120] sm:$0xff]
          %v1044 = vld [vmem:[#allocation6 + $0x128] sm:$0xff]
          %v1045 = vld [vmem:[#allocation6 + $0x130] sm:$0xff]
          %v1046 = vld [vmem:[#allocation6 + $0x138] sm:$0xff]
          %v1047 = vld [vmem:[#allocation6 + $0x140] sm:$0xff]
          %v1048 = vld [vmem:[#allocation6 + $0x148] sm:$0xff]
          %v1049 = vld [vmem:[#allocation6 + $0x150] sm:$0xff]
          %v1050 = vld [vmem:[#allocation6 + $0x158] sm:$0xff]
          %v1051 = vld [vmem:[#allocation6 + $0x160] sm:$0xff]
          %v1052 = vld [vmem:[#allocation6 + $0x168] sm:$0xff]
          %v1053 = vld [vmem:[#allocation6 + $0x170] sm:$0xff]
          %v1054 = vld [vmem:[#allocation6 + $0x178] sm:$0xff]
          %v1055 = vld [vmem:[#allocation6 + $0x180] sm:$0xff]
          %v1056 = vld [vmem:[#allocation6 + $0x188] sm:$0xff]
          %v1057 = vld [vmem:[#allocation6 + $0x190] sm:$0xff]
          %v1058 = vld [vmem:[#allocation6 + $0x198] sm:$0xff]
          %v1059 = vld [vmem:[#allocation6 + $0x1a0] sm:$0xff]
          %v1060 = vld [vmem:[#allocation6 + $0x1a8] sm:$0xff]
          %v1061 = vld [vmem:[#allocation6 + $0x1b0] sm:$0xff]
          %v1062 = vld [vmem:[#allocation6 + $0x1b8] sm:$0xff]
          %v1063 = vld [vmem:[#allocation6 + $0x1c0] sm:$0xff]
          %v1064 = vld [vmem:[#allocation6 + $0x1c8] sm:$0xff]
          %v1065 = vld [vmem:[#allocation6 + $0x1d0] sm:$0xff]
          %v1066 = vld [vmem:[#allocation6 + $0x1d8] sm:$0xff]
          %v1067 = vld [vmem:[#allocation6 + $0x1e0] sm:$0xff]
          %v1068 = vld [vmem:[#allocation6 + $0x1e8] sm:$0xff]
          %v1069 = vld [vmem:[#allocation6 + $0x1f0] sm:$0xff]
          %v1070 = vld [vmem:[#allocation6 + $0x1f8] sm:$0xff]
          %v1071 = vld [vmem:[#allocation6 + $0x200] sm:$0xff]
          %v1072 = vld [vmem:[#allocation6 + $0x208] sm:$0xff]
          %v1073 = vld [vmem:[#allocation6 + $0x210] sm:$0xff]
          %v1074 = vld [vmem:[#allocation6 + $0x218] sm:$0xff]
          %v1075 = vld [vmem:[#allocation6 + $0x220] sm:$0xff]
          %v1076 = vld [vmem:[#allocation6 + $0x228] sm:$0xff]
          %v1077 = vld [vmem:[#allocation6 + $0x230] sm:$0xff]
          %v1078 = vld [vmem:[#allocation6 + $0x238] sm:$0xff]
          %v1079 = vld [vmem:[#allocation6 + $0x240] sm:$0xff]
          %v1080 = vld [vmem:[#allocation6 + $0x248] sm:$0xff]
          %v1081 = vld [vmem:[#allocation6 + $0x250] sm:$0xff]
          %v1082 = vld [vmem:[#allocation6 + $0x258] sm:$0xff]
          %v1083 = vld [vmem:[#allocation6 + $0x260] sm:$0xff]
          %v1084 = vld [vmem:[#allocation6 + $0x268] sm:$0xff]
          %v1085 = vld [vmem:[#allocation6 + $0x270] sm:$0xff]
          %v1086 = vld [vmem:[#allocation6 + $0x278] sm:$0xff]
          %v1087 = vld [vmem:[#allocation6 + $0x280] sm:$0xff]
          %v1088 = vld [vmem:[#allocation6 + $0x288] sm:$0xff]
          %v1089 = vld [vmem:[#allocation6 + $0x290] sm:$0xff]
          %v1090 = vld [vmem:[#allocation6 + $0x298] sm:$0xff]
          %v1091 = vld [vmem:[#allocation6 + $0x2a0] sm:$0xff]
          %v1092 = vld [vmem:[#allocation6 + $0x2a8] sm:$0xff]
          %v1093 = vld [vmem:[#allocation6 + $0x2b0] sm:$0xff]
          %v1094 = vld [vmem:[#allocation6 + $0x2b8] sm:$0xff]
          %v1095 = vld [vmem:[#allocation6 + $0x2c0] sm:$0xff]
          %v1096 = vld [vmem:[#allocation6 + $0x2c8] sm:$0xff]
          %v1097 = vld [vmem:[#allocation6 + $0x2d0] sm:$0xff]
          %v1098 = vld [vmem:[#allocation6 + $0x2d8] sm:$0xff]
          %v1099 = vld [vmem:[#allocation6 + $0x2e0] sm:$0xff]
          %v1100 = vld [vmem:[#allocation6 + $0x2e8] sm:$0xff]
          %v1101 = vld [vmem:[#allocation6 + $0x2f0] sm:$0xff]
          %v1102 = vld [vmem:[#allocation6 + $0x2f8] sm:$0xff]
          %v1103 = vld [vmem:[#allocation6 + $0x300] sm:$0xff]
          %v1104 = vld [vmem:[#allocation6 + $0x308] sm:$0xff]
          %v1105 = vld [vmem:[#allocation6 + $0x310] sm:$0xff]
          %v1106 = vld [vmem:[#allocation6 + $0x318] sm:$0xff]
          %v1107 = vld [vmem:[#allocation6 + $0x320] sm:$0xff]
          %v1108 = vld [vmem:[#allocation6 + $0x328] sm:$0xff]
          %v1109 = vld [vmem:[#allocation6 + $0x330] sm:$0xff]
          %v1110 = vld [vmem:[#allocation6 + $0x338] sm:$0xff]
          %v1111 = vld [vmem:[#allocation6 + $0x340] sm:$0xff]
          %v1112 = vld [vmem:[#allocation6 + $0x348] sm:$0xff]
          %v1113 = vld [vmem:[#allocation6 + $0x350] sm:$0xff]
          %v1114 = vld [vmem:[#allocation6 + $0x358] sm:$0xff]
          %v1115 = vld [vmem:[#allocation6 + $0x360] sm:$0xff]
          %v1116 = vld [vmem:[#allocation6 + $0x368] sm:$0xff]
          %v1117 = vld [vmem:[#allocation6 + $0x370] sm:$0xff]
          %v1118 = vld [vmem:[#allocation6 + $0x378] sm:$0xff]
          %v1119 = vld [vmem:[#allocation6 + $0x380] sm:$0xff]
          %v1120 = vld [vmem:[#allocation6 + $0x388] sm:$0xff]
          %v1121 = vld [vmem:[#allocation6 + $0x390] sm:$0xff]
          %v1122 = vld [vmem:[#allocation6 + $0x398] sm:$0xff]
          %v1123 = vld [vmem:[#allocation6 + $0x3a0] sm:$0xff]
          %v1124 = vld [vmem:[#allocation6 + $0x3a8] sm:$0xff]
          %v1125 = vld [vmem:[#allocation6 + $0x3b0] sm:$0xff]
          %v1126 = vld [vmem:[#allocation6 + $0x3b8] sm:$0xff]
          %v1127 = vld [vmem:[#allocation6 + $0x3c0] sm:$0xff]
          %v1128 = vld [vmem:[#allocation6 + $0x3c8] sm:$0xff]
          %v1129 = vld [vmem:[#allocation6 + $0x3d0] sm:$0xff]
          %v1130 = vld [vmem:[#allocation6 + $0x3d8] sm:$0xff]
          %v1131 = vld [vmem:[#allocation6 + $0x3e0] sm:$0xff]
          %v1132 = vld [vmem:[#allocation6 + $0x3e8] sm:$0xff]
          %v1133 = vld [vmem:[#allocation6 + $0x3f0] sm:$0xff]
          %v1134 = vld [vmem:[#allocation6 + $0x3f8] sm:$0xff]
          %v1135 = vld [vmem:[%s8] sm:$0xff]
          %v1264 = vunpack.c.l.b16 %v1007
          %v1265 = vunpack.c.h.b16 %v1007
          %v1266 = vunpack.c.l.b16 %v1008
          %v1267 = vunpack.c.h.b16 %v1008
          %v1268 = vunpack.c.l.b16 %v1009
          %v1269 = vunpack.c.h.b16 %v1009
          %v1270 = vunpack.c.l.b16 %v1010
          %v1271 = vunpack.c.h.b16 %v1010
          %v1272 = vunpack.c.l.b16 %v1011
          %v1273 = vunpack.c.h.b16 %v1011
          %v1274 = vunpack.c.l.b16 %v1012
          %v1275 = vunpack.c.h.b16 %v1012
          %v1276 = vunpack.c.l.b16 %v1013
          %v1277 = vunpack.c.h.b16 %v1013
          %v1278 = vunpack.c.l.b16 %v1014
          %v1279 = vunpack.c.h.b16 %v1014
          %v1280 = vunpack.c.l.b16 %v1015
          %v1281 = vunpack.c.h.b16 %v1015
          %v1282 = vunpack.c.l.b16 %v1016
          %v1283 = vunpack.c.h.b16 %v1016
          %v1284 = vunpack.c.l.b16 %v1017
          %v1285 = vunpack.c.h.b16 %v1017
          %v1286 = vunpack.c.l.b16 %v1018
          %v1287 = vunpack.c.h.b16 %v1018
          %v1288 = vunpack.c.l.b16 %v1019
          %v1289 = vunpack.c.h.b16 %v1019
          %v1290 = vunpack.c.l.b16 %v1020
          %v1291 = vunpack.c.h.b16 %v1020
          %v1292 = vunpack.c.l.b16 %v1021
          %v1293 = vunpack.c.h.b16 %v1021
          %v1294 = vunpack.c.l.b16 %v1022
          %v1295 = vunpack.c.h.b16 %v1022
          %v1296 = vunpack.c.l.b16 %v1023
          %v1297 = vunpack.c.h.b16 %v1023
          %v1298 = vunpack.c.l.b16 %v1024
          %v1299 = vunpack.c.h.b16 %v1024
          %v1300 = vunpack.c.l.b16 %v1025
          %v1301 = vunpack.c.h.b16 %v1025
          %v1302 = vunpack.c.l.b16 %v1026
          %v1303 = vunpack.c.h.b16 %v1026
          %v1304 = vunpack.c.l.b16 %v1027
          %v1305 = vunpack.c.h.b16 %v1027
          %v1306 = vunpack.c.l.b16 %v1028
          %v1307 = vunpack.c.h.b16 %v1028
          %v1308 = vunpack.c.l.b16 %v1029
          %v1309 = vunpack.c.h.b16 %v1029
          %v1310 = vunpack.c.l.b16 %v1030
          %v1311 = vunpack.c.h.b16 %v1030
          %v1312 = vunpack.c.l.b16 %v1031
          %v1313 = vunpack.c.h.b16 %v1031
          %v1314 = vunpack.c.l.b16 %v1032
          %v1315 = vunpack.c.h.b16 %v1032
          %v1316 = vunpack.c.l.b16 %v1033
          %v1317 = vunpack.c.h.b16 %v1033
          %v1318 = vunpack.c.l.b16 %v1034
          %v1319 = vunpack.c.h.b16 %v1034
          %v1320 = vunpack.c.l.b16 %v1035
          %v1321 = vunpack.c.h.b16 %v1035
          %v1322 = vunpack.c.l.b16 %v1036
          %v1323 = vunpack.c.h.b16 %v1036
          %v1324 = vunpack.c.l.b16 %v1037
          %v1325 = vunpack.c.h.b16 %v1037
          %v1326 = vunpack.c.l.b16 %v1038
          %v1327 = vunpack.c.h.b16 %v1038
          %v1328 = vunpack.c.l.b16 %v1039
          %v1329 = vunpack.c.h.b16 %v1039
          %v1330 = vunpack.c.l.b16 %v1040
          %v1331 = vunpack.c.h.b16 %v1040
          %v1332 = vunpack.c.l.b16 %v1041
          %v1333 = vunpack.c.h.b16 %v1041
          %v1334 = vunpack.c.l.b16 %v1042
          %v1335 = vunpack.c.h.b16 %v1042
          %v1336 = vunpack.c.l.b16 %v1043
          %v1337 = vunpack.c.h.b16 %v1043
          %v1338 = vunpack.c.l.b16 %v1044
          %v1339 = vunpack.c.h.b16 %v1044
          %v1340 = vunpack.c.l.b16 %v1045
          %v1341 = vunpack.c.h.b16 %v1045
          %v1342 = vunpack.c.l.b16 %v1046
          %v1343 = vunpack.c.h.b16 %v1046
          %v1344 = vunpack.c.l.b16 %v1047
          %v1345 = vunpack.c.h.b16 %v1047
          %v1346 = vunpack.c.l.b16 %v1048
          %v1347 = vunpack.c.h.b16 %v1048
          %v1348 = vunpack.c.l.b16 %v1049
          %v1349 = vunpack.c.h.b16 %v1049
          %v1350 = vunpack.c.l.b16 %v1050
          %v1351 = vunpack.c.h.b16 %v1050
          %v1352 = vunpack.c.l.b16 %v1051
          %v1353 = vunpack.c.h.b16 %v1051
          %v1354 = vunpack.c.l.b16 %v1052
          %v1355 = vunpack.c.h.b16 %v1052
          %v1356 = vunpack.c.l.b16 %v1053
          %v1357 = vunpack.c.h.b16 %v1053
          %v1358 = vunpack.c.l.b16 %v1054
          %v1359 = vunpack.c.h.b16 %v1054
          %v1360 = vunpack.c.l.b16 %v1055
          %v1361 = vunpack.c.h.b16 %v1055
          %v1362 = vunpack.c.l.b16 %v1056
          %v1363 = vunpack.c.h.b16 %v1056
          %v1364 = vunpack.c.l.b16 %v1057
          %v1365 = vunpack.c.h.b16 %v1057
          %v1366 = vunpack.c.l.b16 %v1058
          %v1367 = vunpack.c.h.b16 %v1058
          %v1368 = vunpack.c.l.b16 %v1059
          %v1369 = vunpack.c.h.b16 %v1059
          %v1370 = vunpack.c.l.b16 %v1060
          %v1371 = vunpack.c.h.b16 %v1060
          %v1372 = vunpack.c.l.b16 %v1061
          %v1373 = vunpack.c.h.b16 %v1061
          %v1374 = vunpack.c.l.b16 %v1062
          %v1375 = vunpack.c.h.b16 %v1062
          %v1376 = vunpack.c.l.b16 %v1063
          %v1377 = vunpack.c.h.b16 %v1063
          %v1378 = vunpack.c.l.b16 %v1064
          %v1379 = vunpack.c.h.b16 %v1064
          %v1380 = vunpack.c.l.b16 %v1065
          %v1381 = vunpack.c.h.b16 %v1065
          %v1382 = vunpack.c.l.b16 %v1066
          %v1383 = vunpack.c.h.b16 %v1066
          %v1384 = vunpack.c.l.b16 %v1067
          %v1385 = vunpack.c.h.b16 %v1067
          %v1386 = vunpack.c.l.b16 %v1068
          %v1387 = vunpack.c.h.b16 %v1068
          %v1388 = vunpack.c.l.b16 %v1069
          %v1389 = vunpack.c.h.b16 %v1069
          %v1390 = vunpack.c.l.b16 %v1070
          %v1391 = vunpack.c.h.b16 %v1070
          %v1392 = vunpack.c.l.b16 %v1071
          %v1393 = vunpack.c.h.b16 %v1071
          %v1394 = vunpack.c.l.b16 %v1072
          %v1395 = vunpack.c.h.b16 %v1072
          %v1396 = vunpack.c.l.b16 %v1073
          %v1397 = vunpack.c.h.b16 %v1073
          %v1398 = vunpack.c.l.b16 %v1074
          %v1399 = vunpack.c.h.b16 %v1074
          %v1400 = vunpack.c.l.b16 %v1075
          %v1401 = vunpack.c.h.b16 %v1075
          %v1402 = vunpack.c.l.b16 %v1076
          %v1403 = vunpack.c.h.b16 %v1076
          %v1404 = vunpack.c.l.b16 %v1077
          %v1405 = vunpack.c.h.b16 %v1077
          %v1406 = vunpack.c.l.b16 %v1078
          %v1407 = vunpack.c.h.b16 %v1078
          %v1408 = vunpack.c.l.b16 %v1079
          %v1409 = vunpack.c.h.b16 %v1079
          %v1410 = vunpack.c.l.b16 %v1080
          %v1411 = vunpack.c.h.b16 %v1080
          %v1412 = vunpack.c.l.b16 %v1081
          %v1413 = vunpack.c.h.b16 %v1081
          %v1414 = vunpack.c.l.b16 %v1082
          %v1415 = vunpack.c.h.b16 %v1082
          %v1416 = vunpack.c.l.b16 %v1083
          %v1417 = vunpack.c.h.b16 %v1083
          %v1418 = vunpack.c.l.b16 %v1084
          %v1419 = vunpack.c.h.b16 %v1084
          %v1420 = vunpack.c.l.b16 %v1085
          %v1421 = vunpack.c.h.b16 %v1085
          %v1422 = vunpack.c.l.b16 %v1086
          %v1423 = vunpack.c.h.b16 %v1086
          %v1424 = vunpack.c.l.b16 %v1087
          %v1425 = vunpack.c.h.b16 %v1087
          %v1426 = vunpack.c.l.b16 %v1088
          %v1427 = vunpack.c.h.b16 %v1088
          %v1428 = vunpack.c.l.b16 %v1089
          %v1429 = vunpack.c.h.b16 %v1089
          %v1430 = vunpack.c.l.b16 %v1090
          %v1431 = vunpack.c.h.b16 %v1090
          %v1432 = vunpack.c.l.b16 %v1091
          %v1433 = vunpack.c.h.b16 %v1091
          %v1434 = vunpack.c.l.b16 %v1092
          %v1435 = vunpack.c.h.b16 %v1092
          %v1436 = vunpack.c.l.b16 %v1093
          %v1437 = vunpack.c.h.b16 %v1093
          %v1438 = vunpack.c.l.b16 %v1094
          %v1439 = vunpack.c.h.b16 %v1094
          %v1440 = vunpack.c.l.b16 %v1095
          %v1441 = vunpack.c.h.b16 %v1095
          %v1442 = vunpack.c.l.b16 %v1096
          %v1443 = vunpack.c.h.b16 %v1096
          %v1444 = vunpack.c.l.b16 %v1097
          %v1445 = vunpack.c.h.b16 %v1097
          %v1446 = vunpack.c.l.b16 %v1098
          %v1447 = vunpack.c.h.b16 %v1098
          %v1448 = vunpack.c.l.b16 %v1099
          %v1449 = vunpack.c.h.b16 %v1099
          %v1450 = vunpack.c.l.b16 %v1100
          %v1451 = vunpack.c.h.b16 %v1100
          %v1452 = vunpack.c.l.b16 %v1101
          %v1453 = vunpack.c.h.b16 %v1101
          %v1454 = vunpack.c.l.b16 %v1102
          %v1455 = vunpack.c.h.b16 %v1102
          %v1456 = vunpack.c.l.b16 %v1103
          %v1457 = vunpack.c.h.b16 %v1103
          %v1458 = vunpack.c.l.b16 %v1104
          %v1459 = vunpack.c.h.b16 %v1104
          %v1460 = vunpack.c.l.b16 %v1105
          %v1461 = vunpack.c.h.b16 %v1105
          %v1462 = vunpack.c.l.b16 %v1106
          %v1463 = vunpack.c.h.b16 %v1106
          %v1464 = vunpack.c.l.b16 %v1107
          %v1465 = vunpack.c.h.b16 %v1107
          %v1466 = vunpack.c.l.b16 %v1108
          %v1467 = vunpack.c.h.b16 %v1108
          %v1468 = vunpack.c.l.b16 %v1109
          %v1469 = vunpack.c.h.b16 %v1109
          %v1470 = vunpack.c.l.b16 %v1110
          %v1471 = vunpack.c.h.b16 %v1110
          %v1472 = vunpack.c.l.b16 %v1111
          %v1473 = vunpack.c.h.b16 %v1111
          %v1474 = vunpack.c.l.b16 %v1112
          %v1475 = vunpack.c.h.b16 %v1112
          %v1476 = vunpack.c.l.b16 %v1113
          %v1477 = vunpack.c.h.b16 %v1113
          %v1478 = vunpack.c.l.b16 %v1114
          %v1479 = vunpack.c.h.b16 %v1114
          %v1480 = vunpack.c.l.b16 %v1115
          %v1481 = vunpack.c.h.b16 %v1115
          %v1482 = vunpack.c.l.b16 %v1116
          %v1483 = vunpack.c.h.b16 %v1116
          %v1484 = vunpack.c.l.b16 %v1117
          %v1485 = vunpack.c.h.b16 %v1117
          %v1486 = vunpack.c.l.b16 %v1118
          %v1487 = vunpack.c.h.b16 %v1118
          %v1488 = vunpack.c.l.b16 %v1119
          %v1489 = vunpack.c.h.b16 %v1119
          %v1490 = vunpack.c.l.b16 %v1120
          %v1491 = vunpack.c.h.b16 %v1120
          %v1492 = vunpack.c.l.b16 %v1121
          %v1493 = vunpack.c.h.b16 %v1121
          %v1494 = vunpack.c.l.b16 %v1122
          %v1495 = vunpack.c.h.b16 %v1122
          %v1496 = vunpack.c.l.b16 %v1123
          %v1497 = vunpack.c.h.b16 %v1123
          %v1498 = vunpack.c.l.b16 %v1124
          %v1499 = vunpack.c.h.b16 %v1124
          %v1500 = vunpack.c.l.b16 %v1125
          %v1501 = vunpack.c.h.b16 %v1125
          %v1502 = vunpack.c.l.b16 %v1126
          %v1503 = vunpack.c.h.b16 %v1126
          %v1504 = vunpack.c.l.b16 %v1127
          %v1505 = vunpack.c.h.b16 %v1127
          %v1506 = vunpack.c.l.b16 %v1128
          %v1507 = vunpack.c.h.b16 %v1128
          %v1508 = vunpack.c.l.b16 %v1129
          %v1509 = vunpack.c.h.b16 %v1129
          %v1510 = vunpack.c.l.b16 %v1130
          %v1511 = vunpack.c.h.b16 %v1130
          %v1512 = vunpack.c.l.b16 %v1131
          %v1513 = vunpack.c.h.b16 %v1131
          %v1514 = vunpack.c.l.b16 %v1132
          %v1515 = vunpack.c.h.b16 %v1132
          %v1516 = vunpack.c.l.b16 %v1133
          %v1517 = vunpack.c.h.b16 %v1133
          %v1518 = vunpack.c.l.b16 %v1134
          %v1519 = vunpack.c.h.b16 %v1134
          %v1520 = vpack.c.b16 %v1272, %v1264
          %v1521 = vpack.c.b16 %v1273, %v1265
          %v1522 = vpack.c.b16 %v1274, %v1266
          %v1523 = vpack.c.b16 %v1275, %v1267
          %v1524 = vpack.c.b16 %v1276, %v1268
          %v1525 = vpack.c.b16 %v1277, %v1269
          %v1526 = vpack.c.b16 %v1278, %v1270
          %v1527 = vpack.c.b16 %v1279, %v1271
          %v1528 = vpack.c.b16 %v1288, %v1280
          %v1529 = vpack.c.b16 %v1289, %v1281
          %v1530 = vpack.c.b16 %v1290, %v1282
          %v1531 = vpack.c.b16 %v1291, %v1283
          %v1532 = vpack.c.b16 %v1292, %v1284
          %v1533 = vpack.c.b16 %v1293, %v1285
          %v1534 = vpack.c.b16 %v1294, %v1286
          %v1535 = vpack.c.b16 %v1295, %v1287
          %v1536 = vpack.c.b16 %v1304, %v1296
          %v1537 = vpack.c.b16 %v1305, %v1297
          %v1538 = vpack.c.b16 %v1306, %v1298
          %v1539 = vpack.c.b16 %v1307, %v1299
          %v1540 = vpack.c.b16 %v1308, %v1300
          %v1541 = vpack.c.b16 %v1309, %v1301
          %v1542 = vpack.c.b16 %v1310, %v1302
          %v1543 = vpack.c.b16 %v1311, %v1303
          %v1544 = vpack.c.b16 %v1320, %v1312
          %v1545 = vpack.c.b16 %v1321, %v1313
          %v1546 = vpack.c.b16 %v1322, %v1314
          %v1547 = vpack.c.b16 %v1323, %v1315
          %v1548 = vpack.c.b16 %v1324, %v1316
          %v1549 = vpack.c.b16 %v1325, %v1317
          %v1550 = vpack.c.b16 %v1326, %v1318
          %v1551 = vpack.c.b16 %v1327, %v1319
          %v1552 = vpack.c.b16 %v1336, %v1328
          %v1553 = vpack.c.b16 %v1337, %v1329
          %v1554 = vpack.c.b16 %v1338, %v1330
          %v1555 = vpack.c.b16 %v1339, %v1331
          %v1556 = vpack.c.b16 %v1340, %v1332
          %v1557 = vpack.c.b16 %v1341, %v1333
          %v1558 = vpack.c.b16 %v1342, %v1334
          %v1559 = vpack.c.b16 %v1343, %v1335
          %v1560 = vpack.c.b16 %v1352, %v1344
          %v1561 = vpack.c.b16 %v1353, %v1345
          %v1562 = vpack.c.b16 %v1354, %v1346
          %v1563 = vpack.c.b16 %v1355, %v1347
          %v1564 = vpack.c.b16 %v1356, %v1348
          %v1565 = vpack.c.b16 %v1357, %v1349
          %v1566 = vpack.c.b16 %v1358, %v1350
          %v1567 = vpack.c.b16 %v1359, %v1351
          %v1568 = vpack.c.b16 %v1368, %v1360
          %v1569 = vpack.c.b16 %v1369, %v1361
          %v1570 = vpack.c.b16 %v1370, %v1362
          %v1571 = vpack.c.b16 %v1371, %v1363
          %v1572 = vpack.c.b16 %v1372, %v1364
          %v1573 = vpack.c.b16 %v1373, %v1365
          %v1574 = vpack.c.b16 %v1374, %v1366
          %v1575 = vpack.c.b16 %v1375, %v1367
          %v1576 = vpack.c.b16 %v1384, %v1376
          %v1577 = vpack.c.b16 %v1385, %v1377
          %v1578 = vpack.c.b16 %v1386, %v1378
          %v1579 = vpack.c.b16 %v1387, %v1379
          %v1580 = vpack.c.b16 %v1388, %v1380
          %v1581 = vpack.c.b16 %v1389, %v1381
          %v1582 = vpack.c.b16 %v1390, %v1382
          %v1583 = vpack.c.b16 %v1391, %v1383
          %v1584 = vpack.c.b16 %v1400, %v1392
          %v1585 = vpack.c.b16 %v1401, %v1393
          %v1586 = vpack.c.b16 %v1402, %v1394
          %v1587 = vpack.c.b16 %v1403, %v1395
          %v1588 = vpack.c.b16 %v1404, %v1396
          %v1589 = vpack.c.b16 %v1405, %v1397
          %v1590 = vpack.c.b16 %v1406, %v1398
          %v1591 = vpack.c.b16 %v1407, %v1399
          %v1592 = vpack.c.b16 %v1416, %v1408
          %v1593 = vpack.c.b16 %v1417, %v1409
          %v1594 = vpack.c.b16 %v1418, %v1410
          %v1595 = vpack.c.b16 %v1419, %v1411
          %v1596 = vpack.c.b16 %v1420, %v1412
          %v1597 = vpack.c.b16 %v1421, %v1413
          %v1598 = vpack.c.b16 %v1422, %v1414
          %v1599 = vpack.c.b16 %v1423, %v1415
          %v1600 = vpack.c.b16 %v1432, %v1424
          %v1601 = vpack.c.b16 %v1433, %v1425
          %v1602 = vpack.c.b16 %v1434, %v1426
          %v1603 = vpack.c.b16 %v1435, %v1427
          %v1604 = vpack.c.b16 %v1436, %v1428
          %v1605 = vpack.c.b16 %v1437, %v1429
          %v1606 = vpack.c.b16 %v1438, %v1430
          %v1607 = vpack.c.b16 %v1439, %v1431
          %v1608 = vpack.c.b16 %v1448, %v1440
          %v1609 = vpack.c.b16 %v1449, %v1441
          %v1610 = vpack.c.b16 %v1450, %v1442
          %v1611 = vpack.c.b16 %v1451, %v1443
          %v1612 = vpack.c.b16 %v1452, %v1444
          %v1613 = vpack.c.b16 %v1453, %v1445
          %v1614 = vpack.c.b16 %v1454, %v1446
          %v1615 = vpack.c.b16 %v1455, %v1447
          %v1616 = vpack.c.b16 %v1464, %v1456
          %v1617 = vpack.c.b16 %v1465, %v1457
          %v1618 = vpack.c.b16 %v1466, %v1458
          %v1619 = vpack.c.b16 %v1467, %v1459
          %v1620 = vpack.c.b16 %v1468, %v1460
          %v1621 = vpack.c.b16 %v1469, %v1461
          %v1622 = vpack.c.b16 %v1470, %v1462
          %v1623 = vpack.c.b16 %v1471, %v1463
          %v1624 = vpack.c.b16 %v1480, %v1472
          %v1625 = vpack.c.b16 %v1481, %v1473
          %v1626 = vpack.c.b16 %v1482, %v1474
          %v1627 = vpack.c.b16 %v1483, %v1475
          %v1628 = vpack.c.b16 %v1484, %v1476
          %v1629 = vpack.c.b16 %v1485, %v1477
          %v1630 = vpack.c.b16 %v1486, %v1478
          %v1631 = vpack.c.b16 %v1487, %v1479
          %v1632 = vpack.c.b16 %v1496, %v1488
          %v1633 = vpack.c.b16 %v1497, %v1489
          %v1634 = vpack.c.b16 %v1498, %v1490
          %v1635 = vpack.c.b16 %v1499, %v1491
          %v1636 = vpack.c.b16 %v1500, %v1492
          %v1637 = vpack.c.b16 %v1501, %v1493
          %v1638 = vpack.c.b16 %v1502, %v1494
          %v1639 = vpack.c.b16 %v1503, %v1495
          %v1640 = vpack.c.b16 %v1512, %v1504
          %v1641 = vpack.c.b16 %v1513, %v1505
          %v1642 = vpack.c.b16 %v1514, %v1506
          %v1643 = vpack.c.b16 %v1515, %v1507
          %v1644 = vpack.c.b16 %v1516, %v1508
          %v1645 = vpack.c.b16 %v1517, %v1509
          %v1646 = vpack.c.b16 %v1518, %v1510
          %v1647 = vpack.c.b16 %v1519, %v1511
          %v1777 = vlaneseq
          %v1778 = vshrl.u32 %v1777, 7
          %v1779 = vsub.s32 0, %v1778
          %v1780 = vrot.slane %v1135, %v1779
          %v1781 = vlaneseq
          %v1782 = vshrl.u32 %v1781, 7
          %v1783 = vsub.s32 1, %v1782
          %v1784 = vrot.slane %v1135, %v1783
          %v1785 = vlaneseq
          %v1786 = vshrl.u32 %v1785, 7
          %v1787 = vsub.s32 2, %v1786
          %v1788 = vrot.slane %v1135, %v1787
          %v1789 = vlaneseq
          %v1790 = vshrl.u32 %v1789, 7
          %v1791 = vsub.s32 3, %v1790
          %v1792 = vrot.slane %v1135, %v1791
          %v1793 = vlaneseq
          %v1794 = vshrl.u32 %v1793, 7
          %v1795 = vsub.s32 4, %v1794
          %v1796 = vrot.slane %v1135, %v1795
          %v1797 = vlaneseq
          %v1798 = vshrl.u32 %v1797, 7
          %v1799 = vsub.s32 5, %v1798
          %v1800 = vrot.slane %v1135, %v1799
          %v1801 = vlaneseq
          %v1802 = vshrl.u32 %v1801, 7
          %v1803 = vsub.s32 6, %v1802
          %v1804 = vrot.slane %v1135, %v1803
          %v1805 = vlaneseq
          %v1806 = vshrl.u32 %v1805, 7
          %v1807 = vsub.s32 7, %v1806
          %v1808 = vrot.slane %v1135, %v1807
          %1817 = vmatprep.subr.bf16.mxu0 %v1521
          %1818 = vmatpush1.bf16.msra.mxu0 %v1520
          %1819 = vmatprep.subr.bf16.mxu0 %v1529
          %1820 = vmatpush1.bf16.msra.mxu0 %v1528
          %1821 = vmatprep.subr.bf16.mxu0 %v1537
          %1822 = vmatpush1.bf16.msra.mxu0 %v1536
          %1823 = vmatprep.subr.bf16.mxu0 %v1545
          %1824 = vmatpush1.bf16.msra.mxu0 %v1544
          %1825 = vmatprep.subr.bf16.mxu0 %v1553
          %1826 = vmatpush1.bf16.msra.mxu0 %v1552
          %1827 = vmatprep.subr.bf16.mxu0 %v1561
          %1828 = vmatpush1.bf16.msra.mxu0 %v1560
          %1829 = vmatprep.subr.bf16.mxu0 %v1569
          %1830 = vmatpush1.bf16.msra.mxu0 %v1568
          %1831 = vmatprep.subr.bf16.mxu0 %v1577
          %1832 = vmatpush1.bf16.msra.mxu0 %v1576
          %1833 = vmatprep.subr.bf16.mxu0 %v1585
          %1834 = vmatpush1.bf16.msra.mxu0 %v1584
          %1835 = vmatprep.subr.bf16.mxu0 %v1593
          %1836 = vmatpush1.bf16.msra.mxu0 %v1592
          %1837 = vmatprep.subr.bf16.mxu0 %v1601
          %1838 = vmatpush1.bf16.msra.mxu0 %v1600
          %1839 = vmatprep.subr.bf16.mxu0 %v1609
          %1840 = vmatpush1.bf16.msra.mxu0 %v1608
          %1841 = vmatprep.subr.bf16.mxu0 %v1617
          %1842 = vmatpush1.bf16.msra.mxu0 %v1616
          %1843 = vmatprep.subr.bf16.mxu0 %v1625
          %1844 = vmatpush1.bf16.msra.mxu0 %v1624
          %1845 = vmatprep.subr.bf16.mxu0 %v1633
          %1846 = vmatpush1.bf16.msra.mxu0 %v1632
          %1847 = vmatprep.subr.bf16.mxu0 %v1641
          %1848 = vmatpush1.bf16.msra.mxu0 %v1640
          %1849 = vmatprep.mubr.bf16.mxu0 %v1006
          %1850 = vmatmul.mubr.bf16.gmra.mrb[0].mxu0 %v1005
          %v1851 = vpop.f32.mrb[0].mxu0
          %v1852 = vadd.f32 %v1780, %v1851
          %v1853 = vpop.f32.mrb[0].mxu0
          %v1854 = vadd.f32 %v1784, %v1853
          %v1855 = vpop.f32.mrb[0].mxu0
          %v1856 = vpop.f32.mrb[0].mxu0
          %1857 = vdwg.mxu0
          %1858 = vmatprep.subr.bf16.mxu0 %v1523
          %1859 = vmatpush1.bf16.msra.mxu0 %v1522
          %1860 = vmatprep.subr.bf16.mxu0 %v1531
          %1861 = vmatpush1.bf16.msra.mxu0 %v1530
          %1862 = vmatprep.subr.bf16.mxu0 %v1539
          %1863 = vmatpush1.bf16.msra.mxu0 %v1538
          %1864 = vmatprep.subr.bf16.mxu0 %v1547
          %1865 = vmatpush1.bf16.msra.mxu0 %v1546
          %1866 = vmatprep.subr.bf16.mxu0 %v1555
          %1867 = vmatpush1.bf16.msra.mxu0 %v1554
          %1868 = vmatprep.subr.bf16.mxu0 %v1563
          %1869 = vmatpush1.bf16.msra.mxu0 %v1562
          %1870 = vmatprep.subr.bf16.mxu0 %v1571
          %1871 = vmatpush1.bf16.msra.mxu0 %v1570
          %1872 = vmatprep.subr.bf16.mxu0 %v1579
          %1873 = vmatpush1.bf16.msra.mxu0 %v1578
          %1874 = vmatprep.subr.bf16.mxu0 %v1587
          %1875 = vmatpush1.bf16.msra.mxu0 %v1586
          %1876 = vmatprep.subr.bf16.mxu0 %v1595
          %1877 = vmatpush1.bf16.msra.mxu0 %v1594
          %1878 = vmatprep.subr.bf16.mxu0 %v1603
          %1879 = vmatpush1.bf16.msra.mxu0 %v1602
          %1880 = vmatprep.subr.bf16.mxu0 %v1611
          %1881 = vmatpush1.bf16.msra.mxu0 %v1610
          %1882 = vmatprep.subr.bf16.mxu0 %v1619
          %1883 = vmatpush1.bf16.msra.mxu0 %v1618
          %1884 = vmatprep.subr.bf16.mxu0 %v1627
          %1885 = vmatpush1.bf16.msra.mxu0 %v1626
          %1886 = vmatprep.subr.bf16.mxu0 %v1635
          %1887 = vmatpush1.bf16.msra.mxu0 %v1634
          %1888 = vmatprep.subr.bf16.mxu0 %v1643
          %1889 = vmatpush1.bf16.msra.mxu0 %v1642
          %1890 = vmatprep.mubr.bf16.mxu0 %v1006
          %1891 = vmatmul.mubr.bf16.gmra.mrb[0].mxu0 %v1005
          %v1892 = vpop.f32.mrb[0].mxu0
          %v1893 = vadd.f32 %v1788, %v1892
          %v1894 = vpop.f32.mrb[0].mxu0
          %v1895 = vadd.f32 %v1792, %v1894
          %v1896 = vpop.f32.mrb[0].mxu0
          %v1897 = vpop.f32.mrb[0].mxu0
          %1898 = vdwg.mxu0
          %1899 = vmatprep.subr.bf16.mxu0 %v1525
          %1900 = vmatpush1.bf16.msra.mxu0 %v1524
          %1901 = vmatprep.subr.bf16.mxu0 %v1533
          %1902 = vmatpush1.bf16.msra.mxu0 %v1532
          %1903 = vmatprep.subr.bf16.mxu0 %v1541
          %1904 = vmatpush1.bf16.msra.mxu0 %v1540
          %1905 = vmatprep.subr.bf16.mxu0 %v1549
          %1906 = vmatpush1.bf16.msra.mxu0 %v1548
          %1907 = vmatprep.subr.bf16.mxu0 %v1557
          %1908 = vmatpush1.bf16.msra.mxu0 %v1556
          %1909 = vmatprep.subr.bf16.mxu0 %v1565
          %1910 = vmatpush1.bf16.msra.mxu0 %v1564
          %1911 = vmatprep.subr.bf16.mxu0 %v1573
          %1912 = vmatpush1.bf16.msra.mxu0 %v1572
          %1913 = vmatprep.subr.bf16.mxu0 %v1581
          %1914 = vmatpush1.bf16.msra.mxu0 %v1580
          %1915 = vmatprep.subr.bf16.mxu0 %v1589
          %1916 = vmatpush1.bf16.msra.mxu0 %v1588
          %1917 = vmatprep.subr.bf16.mxu0 %v1597
          %1918 = vmatpush1.bf16.msra.mxu0 %v1596
          %1919 = vmatprep.subr.bf16.mxu0 %v1605
          %1920 = vmatpush1.bf16.msra.mxu0 %v1604
          %1921 = vmatprep.subr.bf16.mxu0 %v1613
          %1922 = vmatpush1.bf16.msra.mxu0 %v1612
          %1923 = vmatprep.subr.bf16.mxu0 %v1621
          %1924 = vmatpush1.bf16.msra.mxu0 %v1620
          %1925 = vmatprep.subr.bf16.mxu0 %v1629
          %1926 = vmatpush1.bf16.msra.mxu0 %v1628
          %1927 = vmatprep.subr.bf16.mxu0 %v1637
          %1928 = vmatpush1.bf16.msra.mxu0 %v1636
          %1929 = vmatprep.subr.bf16.mxu0 %v1645
          %1930 = vmatpush1.bf16.msra.mxu0 %v1644
          %1931 = vmatprep.mubr.bf16.mxu0 %v1006
          %1932 = vmatmul.mubr.bf16.gmra.mrb[0].mxu0 %v1005
          %v1933 = vpop.f32.mrb[0].mxu0
          %v1934 = vadd.f32 %v1796, %v1933
          %v1935 = vpop.f32.mrb[0].mxu0
          %v1936 = vadd.f32 %v1800, %v1935
          %v1937 = vpop.f32.mrb[0].mxu0
          %v1938 = vpop.f32.mrb[0].mxu0
          %1939 = vdwg.mxu0
          %1940 = vmatprep.subr.bf16.mxu0 %v1527
          %1941 = vmatpush1.bf16.msra.mxu0 %v1526
          %1942 = vmatprep.subr.bf16.mxu0 %v1535
          %1943 = vmatpush1.bf16.msra.mxu0 %v1534
          %1944 = vmatprep.subr.bf16.mxu0 %v1543
          %1945 = vmatpush1.bf16.msra.mxu0 %v1542
          %1946 = vmatprep.subr.bf16.mxu0 %v1551
          %1947 = vmatpush1.bf16.msra.mxu0 %v1550
          %1948 = vmatprep.subr.bf16.mxu0 %v1559
          %1949 = vmatpush1.bf16.msra.mxu0 %v1558
          %1950 = vmatprep.subr.bf16.mxu0 %v1567
          %1951 = vmatpush1.bf16.msra.mxu0 %v1566
          %1952 = vmatprep.subr.bf16.mxu0 %v1575
          %1953 = vmatpush1.bf16.msra.mxu0 %v1574
          %1954 = vmatprep.subr.bf16.mxu0 %v1583
          %1955 = vmatpush1.bf16.msra.mxu0 %v1582
          %1956 = vmatprep.subr.bf16.mxu0 %v1591
          %1957 = vmatpush1.bf16.msra.mxu0 %v1590
          %1958 = vmatprep.subr.bf16.mxu0 %v1599
          %1959 = vmatpush1.bf16.msra.mxu0 %v1598
          %1960 = vmatprep.subr.bf16.mxu0 %v1607
          %1961 = vmatpush1.bf16.msra.mxu0 %v1606
          %1962 = vmatprep.subr.bf16.mxu0 %v1615
          %1963 = vmatpush1.bf16.msra.mxu0 %v1614
          %1964 = vmatprep.subr.bf16.mxu0 %v1623
          %1965 = vmatpush1.bf16.msra.mxu0 %v1622
          %1966 = vmatprep.subr.bf16.mxu0 %v1631
          %1967 = vmatpush1.bf16.msra.mxu0 %v1630
          %1968 = vmatprep.subr.bf16.mxu0 %v1639
          %1969 = vmatpush1.bf16.msra.mxu0 %v1638
          %1970 = vmatprep.subr.bf16.mxu0 %v1647
          %1971 = vmatpush1.bf16.msra.mxu0 %v1646
          %1972 = vmatprep.mubr.bf16.mxu0 %v1006
          %1973 = vmatmul.mubr.bf16.gmra.mrb[0].mxu0 %v1005
          %v1974 = vpop.f32.mrb[0].mxu0
          %v1975 = vadd.f32 %v1804, %v1974
          %v1976 = vpop.f32.mrb[0].mxu0
          %v1977 = vadd.f32 %v1808, %v1976
          %v1978 = vpop.f32.mrb[0].mxu0
          %v1979 = vpop.f32.mrb[0].mxu0
          %1980 = vdwg.mxu0
          %v1989 = vcombine.low %v1852, %v1854
          %v1990 = vcombine.low %v1893, %v1895
          %v1991 = vcombine.low %v1934, %v1936
          %v1992 = vcombine.low %v1975, %v1977
          %v1994 = vunpack.c.l.s4 1966171168
          %v1995 = vunpack.c.0.s8 %v1994
          %v1996 = vlaneseq
          %v1997 = vshrl.u32 %v1996, 7
          %v1998 = vsub.s32 %v1995, %v1997
          %v1999 = vrot.slane %v1989, %v1998
          %v2001 = vunpack.c.l.s4 1966171168
          %v2002 = vunpack.c.0.s8 %v2001
          %v2003 = vlaneseq
          %v2004 = vshrl.u32 %v2003, 7
          %v2005 = vsub.s32 %v2002, %v2004
          %v2006 = vrot.slane %v1990, %v2005
          %v2008 = vunpack.c.l.s4 1966171168
          %v2009 = vunpack.c.0.s8 %v2008
          %v2010 = vlaneseq
          %v2011 = vshrl.u32 %v2010, 7
          %v2012 = vsub.s32 %v2009, %v2011
          %v2013 = vrot.slane %v1991, %v2012
          %v2015 = vunpack.c.l.s4 1966171168
          %v2016 = vunpack.c.0.s8 %v2015
          %v2017 = vlaneseq
          %v2018 = vshrl.u32 %v2017, 7
          %v2019 = vsub.s32 %v2016, %v2018
          %v2020 = vrot.slane %v1992, %v2019
          %v2021 = vcombine.low %v1999, %v2006
          %v2022 = vcombine.low %v2013, %v2020
          %v2024 = vunpack.c.l.s4 1966171168
          %v2025 = vunpack.c.0.s8 %v2024
          %v2026 = vlaneseq
          %v2027 = vshrl.u32 %v2026, 7
          %v2028 = vsub.s32 %v2025, %v2027
          %v2029 = vrot.slane %v2021, %v2028
          %v2031 = vunpack.c.l.s4 1966171168
          %v2032 = vunpack.c.0.s8 %v2031
          %v2033 = vlaneseq
          %v2034 = vshrl.u32 %v2033, 7
          %v2035 = vsub.s32 %v2032, %v2034
          %v2036 = vrot.slane %v2022, %v2035
          %v2037 = vcombine.low %v2029, %v2036
          %2039 = vst [vmem:[%s378] sm:$0xff] %v2037
        $region76: #{tpu_custom_call.1} parent=55 // pred_fallthru
          _
        %s2040 = sand.u32 %s241, 1
        %s2041 = scalar_lea.sflag [#allocation5], %s2040
        %s2042 = sand.u32 %s241, 1
        %s2043 = smul.addr %s2042, 8
        %s2044 = scalar_lea.vmem [#allocation8], %s2043
        // Predicated region
        $region77: #{tpu_custom_call.1} parent=55 // pred_check
          %p2045 = pneg %p251
        $region78: #{tpu_custom_call.1} parent=55 // pred_check_branch
          %2047 = sbr.rel (%p2045) target = $region80
        $region79: #{tpu_custom_call.1} parent=55 // pred_region
          %s2049 = ssub.s32 128, 128
          %2050 = vsyncadd %s2041, %s2049
          %s2051 = smul.addr %s29, 8
          %s2052 = smul.addr %s2051, 16
          %s2053 = scalar_lea.hbm %s9, %s2052
          %s2055 = sshll.u32 %s2044, 4
          %s2056 = int_to_ptr.vmem [resolvable:$true] %s2055
          %2058 = dma.vmem_to_hbm [thread:$0]  %s2056, 128, %s2053, %s2041
        $region80: #{tpu_custom_call.1} parent=55 // pred_fallthru
          _
      $region56: #{tpu_custom_call.1} parent=5 // pred_fallthru
        _
      %p2059 = scmp.le.s32.totalorder 2, %s20
      // Predicated region
      $region81: #{tpu_custom_call.1} parent=5 // pred_check
        %p2060 = pneg %p2059
      $region82: #{tpu_custom_call.1} parent=5 // pred_check_branch
        %2062 = sbr.rel (%p2060) target = $region84
      $region83: #{tpu_custom_call.1} parent=5 // pred_region
        %s2063 = ssub.s32 %s20, 2
        // Predicated region
        $region85: #{tpu_custom_call.1} parent=83 // pred_check
          %p2064 = pneg %p257
        $region86: #{tpu_custom_call.1} parent=83 // pred_check_branch
          %2066 = sbr.rel (%p2064) target = $region88
        $region87: #{tpu_custom_call.1} parent=83 // pred_region
          %s2067 = sand.u32 %s242, 1
          %s2068 = scalar_lea.sflag [#allocation5], %s2067
          %s2069 = sand.u32 %s242, 1
          %s2070 = smul.addr %s2069, 8
          %s2071 = scalar_lea.vmem [#allocation8], %s2070
          %2072 = dma.done %s2068, 128
        $region88: #{tpu_custom_call.1} parent=83 // pred_fallthru
          _
      $region84: #{tpu_custom_call.1} parent=5 // pred_fallthru
        _
    $region6: #{tpu_custom_call.1} parent=1 // loop_footer
      %s24 = sadd.s32 1, %s20
    $region7: #{tpu_custom_call.1} parent=1 // loop_footer_branch
      %19 = sbr.rel target = $region3
    $region8: #{tpu_custom_call.1} parent=1 // loop_exit
      _
    %2073 = vsyncpa [#allocation4], 1
    %s2074 = scalar_lea.sflag [#allocation4], 1
    %2075 = vsyncpa %s2074, 1
    %2076 = vsyncpa [#allocation7], 1
    %2077 = vsyncpa [#allocation5], 1
    %s2078 = scalar_lea.sflag [#allocation5], 1
    %2079 = vsyncpa %s2078, 1

</llo_original>
